<compile_context>
chip_gen: v6e
topology: v6e:2x2x1
jax: 0.10.0
libtpu: 0.0.40
codegen_flags: <defaults>
</compile_context>

<pallas_src>
import math

import jax
import jax.numpy as jnp
import numpy as np
from jax.experimental import pallas as pl
from jax.experimental.pallas import tpu as pltpu

HIDDEN = 20
INPUT = 25
NUM_CLASSES = 1
FC_DIM = 100

LANE = 128                # one gate slot = one vreg lane-tile
GATE_W = 4 * LANE         # packed gate width (i, f, o, g slots)
SUBLANE = 8               # batch padded to a full sublane tile


def lstm1_kernel(x2d_ref, h0_ref, c0_ref,
                 wih_t_ref, whh_t_ref, gate_b_ref,
                 w1_ref, b1_ref, w2_ref, b2_ref, w3_row_ref, b3_ref,
                 out_ref):
    # x2d_ref: (S*Bp, I) bf16, time-major, batch padded to Bp (multiple of 8).
    # h0/c0: (Bp, 128) f32 with lanes >= HIDDEN (and padded batch rows) zero.
    # LSTM / FC weights bf16, gate-slot packed / 128-padded; biases f32.
    Bp = h0_ref.shape[0]                  # padded batch (static, multiple of 8)
    S = x2d_ref.shape[0] // Bp            # static sequence length

    # Hoisted input projection for all timesteps at once (single MXU matmul,
    # off the serial chain).  Kept register-resident: (S*Bp, 512) f32.
    xw = (jnp.dot(x2d_ref[...], wih_t_ref[...],
                  preferred_element_type=jnp.float32)
          + gate_b_ref[...])

    whh = whh_t_ref[...]                  # loop-invariant MXU RHS, loaded once
    h = h0_ref[...]                       # (Bp, 128) f32
    c = c0_ref[...]                       # (Bp, 128) f32

    # Fully unrolled serial recurrence; all slices are static and (8, 128)
    # tile-aligned, so they are free views (no XLU masking / rotation).
    for t in range(S):
        xw_t = xw[t * Bp:(t + 1) * Bp, :]                       # (Bp, 512) f32
        gates = xw_t + jnp.dot(h.astype(jnp.bfloat16), whh,
                               preferred_element_type=jnp.float32)
        # Lane-aligned gate slots in order i, f, o, g:
        #   one sigmoid over 3 slots, one tanh over the last slot.
        ifo = jax.nn.sigmoid(gates[:, 0:3 * LANE])              # (Bp, 384) f32
        g = jnp.tanh(gates[:, 3 * LANE:4 * LANE])               # (Bp, 128) f32
        i = ifo[:, 0 * LANE:1 * LANE]
        f = ifo[:, 1 * LANE:2 * LANE]
        o = ifo[:, 2 * LANE:3 * LANE]
        c = f * c + i * g                                       # padded lanes stay 0
        h = o * jnp.tanh(c)                                     # padded lanes stay 0

    # hn.view(-1, hidden) -> ReLU -> fc_1 -> ReLU -> fc_2 -> ReLU -> fc
    # bf16 matmul operands, f32 accumulation, f32 biases / activations.
    a = jnp.maximum(h, 0.0).astype(jnp.bfloat16)
    a = jnp.maximum(
        jnp.dot(a, w1_ref[...], preferred_element_type=jnp.float32) + b1_ref[...],
        0.0).astype(jnp.bfloat16)
    a = jnp.maximum(
        jnp.dot(a, w2_ref[...], preferred_element_type=jnp.float32) + b2_ref[...],
        0.0)
    # Final (100 -> 1) layer: VPU multiply + cross-lane reduce (avoids a full
    # 128x128 MXU latch that would produce 127 dead output lanes).
    res = jnp.sum(a * w3_row_ref[...], axis=-1, keepdims=True)  # (Bp, 1) f32
    # Lane-dense (Bp, 128) store; every lane holds the scalar result + bias.
    out_ref[...] = (jnp.broadcast_to(res, (Bp, LANE)) + b3_ref[...]).astype(out_ref.dtype)


def pack_params(params):
    """One-time repack of PyTorch-layout parameters into the kernel layout.

    Call once and reuse across forwards (hoisted out of the per-call path).
    Zero padding everywhere is what keeps the padded-lane invariant of h/c.
    """
    def pack_gates(m_t):
        # m_t: (rows, 4H) with PyTorch gate order (i, f, g, o) along columns.
        # Scatter each gate into its own 128-lane slot, kernel order i, f, o, g.
        rows = m_t.shape[0]
        out = jnp.zeros((rows, GATE_W), jnp.float32)
        for slot, tg in enumerate((0, 1, 3, 2)):
            out = out.at[:, slot * LANE: slot * LANE + HIDDEN].set(
                m_t[:, tg * HIDDEN:(tg + 1) * HIDDEN])
        return out

    def pad2(m, r, c, dtype=jnp.float32):
        return (jnp.zeros((r, c), jnp.float32)
                .at[:m.shape[0], :m.shape[1]].set(m)
                .astype(dtype))

    wih_t = pack_gates(params["w_ih"].T).astype(jnp.bfloat16)              # (I, 512)
    whh_t = pad2(pack_gates(params["w_hh"].T), LANE, GATE_W, jnp.bfloat16)  # (128, 512)
    gate_b = pack_gates((params["b_ih"] + params["b_hh"]).reshape(1, -1))   # (1, 512) f32

    w1 = pad2(params["w_fc1"].T, LANE, LANE, jnp.bfloat16)      # valid (20, 100)
    b1 = pad2(params["b_fc1"].reshape(1, -1), 1, LANE)
    w2 = pad2(params["w_fc2"].T, LANE, LANE, jnp.bfloat16)      # valid (100, 100)
    b2 = pad2(params["b_fc2"].reshape(1, -1), 1, LANE)
    w3_row = pad2(params["w_fc"].reshape(1, -1), 1, LANE)       # (1, 128) f32
    b3 = jnp.full((1, LANE), params["b_fc"][0], jnp.float32)    # scalar in all lanes

    return (wih_t, whh_t, gate_b, w1, b1, w2, b2, w3_row, b3)


def _lstm1_forward_impl(x, h0, c0, packed):
    """x: (batch, seq, input) f32 (batch_first).  Returns (batch, 1) f32."""
    B, S, I = x.shape
    Bp = -(-B // SUBLANE) * SUBLANE              # pad batch to a sublane tile

    # Per-call activation prep only (weights are pre-packed in `packed`).
    xp = jnp.zeros((Bp, S, I), jnp.float32).at[:B].set(x)
    x2d = jnp.transpose(xp, (1, 0, 2)).reshape(S * Bp, I).astype(jnp.bfloat16)
    h0p = jnp.zeros((Bp, LANE), jnp.float32).at[:B, :HIDDEN].set(h0)
    c0p = jnp.zeros((Bp, LANE), jnp.float32).at[:B, :HIDDEN].set(c0)

    args = (x2d, h0p, c0p) + tuple(packed)
    vmem = pl.BlockSpec(memory_space=pltpu.MemorySpace.VMEM)
    out_full = pl.pallas_call(
        lstm1_kernel,
        out_shape=jax.ShapeDtypeStruct((Bp, LANE), jnp.float32),
        in_specs=[vmem] * len(args),
        out_specs=vmem,
    )(*args)
    return out_full[:B, :NUM_CLASSES]


lstm1_forward = jax.jit(_lstm1_forward_impl)


def init_params(key):
    """Deterministic parameter init matching PyTorch default shapes/ranges."""
    ks = jax.random.split(key, 10)
    k_lstm = 1.0 / math.sqrt(HIDDEN)
    k_fc1 = 1.0 / math.sqrt(HIDDEN)
    k_fc2 = 1.0 / math.sqrt(FC_DIM)
    k_fc = 1.0 / math.sqrt(FC_DIM)

    def u(k, shape, bound):
        return jax.random.uniform(k, shape, jnp.float32, -bound, bound)

    return {
        "w_ih": u(ks[0], (4 * HIDDEN, INPUT), k_lstm),
        "w_hh": u(ks[1], (4 * HIDDEN, HIDDEN), k_lstm),
        "b_ih": u(ks[2], (4 * HIDDEN,), k_lstm),
        "b_hh": u(ks[3], (4 * HIDDEN,), k_lstm),
        "w_fc1": u(ks[4], (FC_DIM, HIDDEN), k_fc1),
        "b_fc1": u(ks[5], (FC_DIM,), k_fc1),
        "w_fc2": u(ks[6], (FC_DIM, FC_DIM), k_fc2),
        "b_fc2": u(ks[7], (FC_DIM,), k_fc2),
        "w_fc": u(ks[8], (NUM_CLASSES, FC_DIM), k_fc),
        "b_fc": u(ks[9], (NUM_CLASSES,), k_fc),
    }


def lstm1_reference(x, h0, c0, p):
    """Pure-JAX f32 reference of the PyTorch forward, for correctness check."""
    B, S, I = x.shape
    h, c = h0, c0
    for t in range(S):
        x_t = x[:, t, :]
        gates = x_t @ p["w_ih"].T + p["b_ih"] + h @ p["w_hh"].T + p["b_hh"]
        i = jax.nn.sigmoid(gates[:, 0:HIDDEN])
        f = jax.nn.sigmoid(gates[:, HIDDEN:2 * HIDDEN])
        g = jnp.tanh(gates[:, 2 * HIDDEN:3 * HIDDEN])
        o = jax.nn.sigmoid(gates[:, 3 * HIDDEN:4 * HIDDEN])
        c = f * c + i * g
        h = o * jnp.tanh(c)
    out = jnp.maximum(h, 0.0)
    out = jnp.maximum(out @ p["w_fc1"].T + p["b_fc1"], 0.0)
    out = jnp.maximum(out @ p["w_fc2"].T + p["b_fc2"], 0.0)
    return out @ p["w_fc"].T + p["b_fc"]


if __name__ == "__main__":
    batch, seq = 2, 8
    key = jax.random.PRNGKey(0)
    k_x, k_h, k_c, k_p = jax.random.split(key, 4)

    x = jax.random.uniform(k_x, (batch, seq, INPUT), jnp.float32)
    # torch.rand initial states -> deterministic uniform [0,1) inputs here
    h0 = jax.random.uniform(k_h, (batch, HIDDEN), jnp.float32)
    c0 = jax.random.uniform(k_c, (batch, HIDDEN), jnp.float32)
    params = init_params(k_p)

    packed = pack_params(params)               # one-time weight repack
    out = lstm1_forward(x, h0, c0, packed)
    out = jax.block_until_ready(out)

    ref = lstm1_reference(x, h0, c0, params)
    assert out.shape == (batch, NUM_CLASSES)
    np.testing.assert_allclose(np.asarray(out), np.asarray(ref), rtol=2e-2, atol=2e-2)

    print("KERNEL_OK")
</pallas_src>

<mosaic_0001>
module attributes {stable_mosaic.version = 11 : i64} {
  func.func @lstm1_kernel(%arg0: memref<64x25xbf16, #tpu.memory_space<vmem>>, %arg1: memref<8x128xf32, #tpu.memory_space<vmem>>, %arg2: memref<8x128xf32, #tpu.memory_space<vmem>>, %arg3: memref<25x512xbf16, #tpu.memory_space<vmem>>, %arg4: memref<128x512xbf16, #tpu.memory_space<vmem>>, %arg5: memref<1x512xf32, #tpu.memory_space<vmem>>, %arg6: memref<128x128xbf16, #tpu.memory_space<vmem>>, %arg7: memref<1x128xf32, #tpu.memory_space<vmem>>, %arg8: memref<128x128xbf16, #tpu.memory_space<vmem>>, %arg9: memref<1x128xf32, #tpu.memory_space<vmem>>, %arg10: memref<1x128xf32, #tpu.memory_space<vmem>>, %arg11: memref<1x128xf32, #tpu.memory_space<vmem>>, %arg12: memref<8x128xf32, #tpu.memory_space<vmem>>) attributes {dimension_semantics = [], scalar_prefetch = 0 : i64, scratch_operands = 0 : i64, tpu.core_type = #tpu.core_type<tc>} {
    %c0 = arith.constant 0 : index
    %c0_0 = arith.constant 0 : index
    %0 = vector.load %arg0[%c0, %c0_0] : memref<64x25xbf16, #tpu.memory_space<vmem>>, vector<64x25xbf16>
    %c0_1 = arith.constant 0 : index
    %c0_2 = arith.constant 0 : index
    %1 = vector.load %arg3[%c0_1, %c0_2] : memref<25x512xbf16, #tpu.memory_space<vmem>>, vector<25x512xbf16>
    %cst = arith.constant dense<0.000000e+00> : vector<64x512xf32>
    %2 = tpu.matmul %0, %1, %cst {dimension_numbers = #tpu.dot_dimension_numbers<[1], [0], [0], [1], [0, 0, 1, 1], [], []>} : vector<64x25xbf16>, vector<25x512xbf16>, vector<64x512xf32> -> vector<64x512xf32>
    %c0_3 = arith.constant 0 : index
    %c0_4 = arith.constant 0 : index
    %3 = vector.load %arg5[%c0_3, %c0_4] : memref<1x512xf32, #tpu.memory_space<vmem>>, vector<1x512xf32>
    %4 = vector.broadcast %3 : vector<1x512xf32> to vector<64x512xf32>
    %5 = arith.addf %2, %4 : vector<64x512xf32>
    %c0_5 = arith.constant 0 : index
    %c0_6 = arith.constant 0 : index
    %6 = vector.load %arg4[%c0_5, %c0_6] : memref<128x512xbf16, #tpu.memory_space<vmem>>, vector<128x512xbf16>
    %c0_7 = arith.constant 0 : index
    %c0_8 = arith.constant 0 : index
    %7 = vector.load %arg1[%c0_7, %c0_8] : memref<8x128xf32, #tpu.memory_space<vmem>>, vector<8x128xf32>
    %c0_9 = arith.constant 0 : index
    %c0_10 = arith.constant 0 : index
    %8 = vector.load %arg2[%c0_9, %c0_10] : memref<8x128xf32, #tpu.memory_space<vmem>>, vector<8x128xf32>
    %9 = vector.extract_strided_slice %5 {offsets = [0, 0], sizes = [8, 512], strides = [1, 1]} : vector<64x512xf32> to vector<8x512xf32>
    %10 = arith.truncf %7 : vector<8x128xf32> to vector<8x128xbf16>
    %cst_11 = arith.constant dense<0.000000e+00> : vector<8x512xf32>
    %11 = tpu.matmul %10, %6, %cst_11 {dimension_numbers = #tpu.dot_dimension_numbers<[1], [0], [0], [1], [0, 0, 1, 1], [], []>} : vector<8x128xbf16>, vector<128x512xbf16>, vector<8x512xf32> -> vector<8x512xf32>
    %12 = arith.addf %9, %11 : vector<8x512xf32>
    %13 = vector.extract_strided_slice %12 {offsets = [0, 0], sizes = [8, 384], strides = [1, 1]} : vector<8x512xf32> to vector<8x384xf32>
    %14 = arith.negf %13 : vector<8x384xf32>
    %15 = math.exp %14 : vector<8x384xf32>
    %cst_12 = arith.constant 1.000000e+00 : f32
    %16 = vector.broadcast %cst_12 : f32 to vector<8x384xf32>
    %17 = arith.addf %16, %15 : vector<8x384xf32>
    %18 = arith.divf %16, %17 : vector<8x384xf32>
    %19 = vector.extract_strided_slice %12 {offsets = [0, 384], sizes = [8, 128], strides = [1, 1]} : vector<8x512xf32> to vector<8x128xf32>
    %20 = math.tanh %19 : vector<8x128xf32>
    %21 = vector.extract_strided_slice %18 {offsets = [0, 0], sizes = [8, 128], strides = [1, 1]} : vector<8x384xf32> to vector<8x128xf32>
    %22 = vector.extract_strided_slice %18 {offsets = [0, 128], sizes = [8, 128], strides = [1, 1]} : vector<8x384xf32> to vector<8x128xf32>
    %23 = vector.extract_strided_slice %18 {offsets = [0, 256], sizes = [8, 128], strides = [1, 1]} : vector<8x384xf32> to vector<8x128xf32>
    %24 = arith.mulf %22, %8 : vector<8x128xf32>
    %25 = arith.mulf %21, %20 : vector<8x128xf32>
    %26 = arith.addf %24, %25 : vector<8x128xf32>
    %27 = math.tanh %26 : vector<8x128xf32>
    %28 = arith.mulf %23, %27 : vector<8x128xf32>
    %29 = vector.extract_strided_slice %5 {offsets = [8, 0], sizes = [8, 512], strides = [1, 1]} : vector<64x512xf32> to vector<8x512xf32>
    %30 = arith.truncf %28 : vector<8x128xf32> to vector<8x128xbf16>
    %cst_13 = arith.constant dense<0.000000e+00> : vector<8x512xf32>
    %31 = tpu.matmul %30, %6, %cst_13 {dimension_numbers = #tpu.dot_dimension_numbers<[1], [0], [0], [1], [0, 0, 1, 1], [], []>} : vector<8x128xbf16>, vector<128x512xbf16>, vector<8x512xf32> -> vector<8x512xf32>
    %32 = arith.addf %29, %31 : vector<8x512xf32>
    %33 = vector.extract_strided_slice %32 {offsets = [0, 0], sizes = [8, 384], strides = [1, 1]} : vector<8x512xf32> to vector<8x384xf32>
    %34 = arith.negf %33 : vector<8x384xf32>
    %35 = math.exp %34 : vector<8x384xf32>
    %cst_14 = arith.constant 1.000000e+00 : f32
    %36 = vector.broadcast %cst_14 : f32 to vector<8x384xf32>
    %37 = arith.addf %36, %35 : vector<8x384xf32>
    %38 = arith.divf %36, %37 : vector<8x384xf32>
    %39 = vector.extract_strided_slice %32 {offsets = [0, 384], sizes = [8, 128], strides = [1, 1]} : vector<8x512xf32> to vector<8x128xf32>
    %40 = math.tanh %39 : vector<8x128xf32>
    %41 = vector.extract_strided_slice %38 {offsets = [0, 0], sizes = [8, 128], strides = [1, 1]} : vector<8x384xf32> to vector<8x128xf32>
    %42 = vector.extract_strided_slice %38 {offsets = [0, 128], sizes = [8, 128], strides = [1, 1]} : vector<8x384xf32> to vector<8x128xf32>
    %43 = vector.extract_strided_slice %38 {offsets = [0, 256], sizes = [8, 128], strides = [1, 1]} : vector<8x384xf32> to vector<8x128xf32>
    %44 = arith.mulf %42, %26 : vector<8x128xf32>
    %45 = arith.mulf %41, %40 : vector<8x128xf32>
    %46 = arith.addf %44, %45 : vector<8x128xf32>
    %47 = math.tanh %46 : vector<8x128xf32>
    %48 = arith.mulf %43, %47 : vector<8x128xf32>
    %49 = vector.extract_strided_slice %5 {offsets = [16, 0], sizes = [8, 512], strides = [1, 1]} : vector<64x512xf32> to vector<8x512xf32>
    %50 = arith.truncf %48 : vector<8x128xf32> to vector<8x128xbf16>
    %cst_15 = arith.constant dense<0.000000e+00> : vector<8x512xf32>
    %51 = tpu.matmul %50, %6, %cst_15 {dimension_numbers = #tpu.dot_dimension_numbers<[1], [0], [0], [1], [0, 0, 1, 1], [], []>} : vector<8x128xbf16>, vector<128x512xbf16>, vector<8x512xf32> -> vector<8x512xf32>
    %52 = arith.addf %49, %51 : vector<8x512xf32>
    %53 = vector.extract_strided_slice %52 {offsets = [0, 0], sizes = [8, 384], strides = [1, 1]} : vector<8x512xf32> to vector<8x384xf32>
    %54 = arith.negf %53 : vector<8x384xf32>
    %55 = math.exp %54 : vector<8x384xf32>
    %cst_16 = arith.constant 1.000000e+00 : f32
    %56 = vector.broadcast %cst_16 : f32 to vector<8x384xf32>
    %57 = arith.addf %56, %55 : vector<8x384xf32>
    %58 = arith.divf %56, %57 : vector<8x384xf32>
    %59 = vector.extract_strided_slice %52 {offsets = [0, 384], sizes = [8, 128], strides = [1, 1]} : vector<8x512xf32> to vector<8x128xf32>
    %60 = math.tanh %59 : vector<8x128xf32>
    %61 = vector.extract_strided_slice %58 {offsets = [0, 0], sizes = [8, 128], strides = [1, 1]} : vector<8x384xf32> to vector<8x128xf32>
    %62 = vector.extract_strided_slice %58 {offsets = [0, 128], sizes = [8, 128], strides = [1, 1]} : vector<8x384xf32> to vector<8x128xf32>
    %63 = vector.extract_strided_slice %58 {offsets = [0, 256], sizes = [8, 128], strides = [1, 1]} : vector<8x384xf32> to vector<8x128xf32>
    %64 = arith.mulf %62, %46 : vector<8x128xf32>
    %65 = arith.mulf %61, %60 : vector<8x128xf32>
    %66 = arith.addf %64, %65 : vector<8x128xf32>
    %67 = math.tanh %66 : vector<8x128xf32>
    %68 = arith.mulf %63, %67 : vector<8x128xf32>
    %69 = vector.extract_strided_slice %5 {offsets = [24, 0], sizes = [8, 512], strides = [1, 1]} : vector<64x512xf32> to vector<8x512xf32>
    %70 = arith.truncf %68 : vector<8x128xf32> to vector<8x128xbf16>
    %cst_17 = arith.constant dense<0.000000e+00> : vector<8x512xf32>
    %71 = tpu.matmul %70, %6, %cst_17 {dimension_numbers = #tpu.dot_dimension_numbers<[1], [0], [0], [1], [0, 0, 1, 1], [], []>} : vector<8x128xbf16>, vector<128x512xbf16>, vector<8x512xf32> -> vector<8x512xf32>
    %72 = arith.addf %69, %71 : vector<8x512xf32>
    %73 = vector.extract_strided_slice %72 {offsets = [0, 0], sizes = [8, 384], strides = [1, 1]} : vector<8x512xf32> to vector<8x384xf32>
    %74 = arith.negf %73 : vector<8x384xf32>
    %75 = math.exp %74 : vector<8x384xf32>
    %cst_18 = arith.constant 1.000000e+00 : f32
    %76 = vector.broadcast %cst_18 : f32 to vector<8x384xf32>
    %77 = arith.addf %76, %75 : vector<8x384xf32>
    %78 = arith.divf %76, %77 : vector<8x384xf32>
    %79 = vector.extract_strided_slice %72 {offsets = [0, 384], sizes = [8, 128], strides = [1, 1]} : vector<8x512xf32> to vector<8x128xf32>
    %80 = math.tanh %79 : vector<8x128xf32>
    %81 = vector.extract_strided_slice %78 {offsets = [0, 0], sizes = [8, 128], strides = [1, 1]} : vector<8x384xf32> to vector<8x128xf32>
    %82 = vector.extract_strided_slice %78 {offsets = [0, 128], sizes = [8, 128], strides = [1, 1]} : vector<8x384xf32> to vector<8x128xf32>
    %83 = vector.extract_strided_slice %78 {offsets = [0, 256], sizes = [8, 128], strides = [1, 1]} : vector<8x384xf32> to vector<8x128xf32>
    %84 = arith.mulf %82, %66 : vector<8x128xf32>
    %85 = arith.mulf %81, %80 : vector<8x128xf32>
    %86 = arith.addf %84, %85 : vector<8x128xf32>
    %87 = math.tanh %86 : vector<8x128xf32>
    %88 = arith.mulf %83, %87 : vector<8x128xf32>
    %89 = vector.extract_strided_slice %5 {offsets = [32, 0], sizes = [8, 512], strides = [1, 1]} : vector<64x512xf32> to vector<8x512xf32>
    %90 = arith.truncf %88 : vector<8x128xf32> to vector<8x128xbf16>
    %cst_19 = arith.constant dense<0.000000e+00> : vector<8x512xf32>
    %91 = tpu.matmul %90, %6, %cst_19 {dimension_numbers = #tpu.dot_dimension_numbers<[1], [0], [0], [1], [0, 0, 1, 1], [], []>} : vector<8x128xbf16>, vector<128x512xbf16>, vector<8x512xf32> -> vector<8x512xf32>
    %92 = arith.addf %89, %91 : vector<8x512xf32>
    %93 = vector.extract_strided_slice %92 {offsets = [0, 0], sizes = [8, 384], strides = [1, 1]} : vector<8x512xf32> to vector<8x384xf32>
    %94 = arith.negf %93 : vector<8x384xf32>
    %95 = math.exp %94 : vector<8x384xf32>
    %cst_20 = arith.constant 1.000000e+00 : f32
    %96 = vector.broadcast %cst_20 : f32 to vector<8x384xf32>
    %97 = arith.addf %96, %95 : vector<8x384xf32>
    %98 = arith.divf %96, %97 : vector<8x384xf32>
    %99 = vector.extract_strided_slice %92 {offsets = [0, 384], sizes = [8, 128], strides = [1, 1]} : vector<8x512xf32> to vector<8x128xf32>
    %100 = math.tanh %99 : vector<8x128xf32>
    %101 = vector.extract_strided_slice %98 {offsets = [0, 0], sizes = [8, 128], strides = [1, 1]} : vector<8x384xf32> to vector<8x128xf32>
    %102 = vector.extract_strided_slice %98 {offsets = [0, 128], sizes = [8, 128], strides = [1, 1]} : vector<8x384xf32> to vector<8x128xf32>
    %103 = vector.extract_strided_slice %98 {offsets = [0, 256], sizes = [8, 128], strides = [1, 1]} : vector<8x384xf32> to vector<8x128xf32>
    %104 = arith.mulf %102, %86 : vector<8x128xf32>
    %105 = arith.mulf %101, %100 : vector<8x128xf32>
    %106 = arith.addf %104, %105 : vector<8x128xf32>
    %107 = math.tanh %106 : vector<8x128xf32>
    %108 = arith.mulf %103, %107 : vector<8x128xf32>
    %109 = vector.extract_strided_slice %5 {offsets = [40, 0], sizes = [8, 512], strides = [1, 1]} : vector<64x512xf32> to vector<8x512xf32>
    %110 = arith.truncf %108 : vector<8x128xf32> to vector<8x128xbf16>
    %cst_21 = arith.constant dense<0.000000e+00> : vector<8x512xf32>
    %111 = tpu.matmul %110, %6, %cst_21 {dimension_numbers = #tpu.dot_dimension_numbers<[1], [0], [0], [1], [0, 0, 1, 1], [], []>} : vector<8x128xbf16>, vector<128x512xbf16>, vector<8x512xf32> -> vector<8x512xf32>
    %112 = arith.addf %109, %111 : vector<8x512xf32>
    %113 = vector.extract_strided_slice %112 {offsets = [0, 0], sizes = [8, 384], strides = [1, 1]} : vector<8x512xf32> to vector<8x384xf32>
    %114 = arith.negf %113 : vector<8x384xf32>
    %115 = math.exp %114 : vector<8x384xf32>
    %cst_22 = arith.constant 1.000000e+00 : f32
    %116 = vector.broadcast %cst_22 : f32 to vector<8x384xf32>
    %117 = arith.addf %116, %115 : vector<8x384xf32>
    %118 = arith.divf %116, %117 : vector<8x384xf32>
    %119 = vector.extract_strided_slice %112 {offsets = [0, 384], sizes = [8, 128], strides = [1, 1]} : vector<8x512xf32> to vector<8x128xf32>
    %120 = math.tanh %119 : vector<8x128xf32>
    %121 = vector.extract_strided_slice %118 {offsets = [0, 0], sizes = [8, 128], strides = [1, 1]} : vector<8x384xf32> to vector<8x128xf32>
    %122 = vector.extract_strided_slice %118 {offsets = [0, 128], sizes = [8, 128], strides = [1, 1]} : vector<8x384xf32> to vector<8x128xf32>
    %123 = vector.extract_strided_slice %118 {offsets = [0, 256], sizes = [8, 128], strides = [1, 1]} : vector<8x384xf32> to vector<8x128xf32>
    %124 = arith.mulf %122, %106 : vector<8x128xf32>
    %125 = arith.mulf %121, %120 : vector<8x128xf32>
    %126 = arith.addf %124, %125 : vector<8x128xf32>
    %127 = math.tanh %126 : vector<8x128xf32>
    %128 = arith.mulf %123, %127 : vector<8x128xf32>
    %129 = vector.extract_strided_slice %5 {offsets = [48, 0], sizes = [8, 512], strides = [1, 1]} : vector<64x512xf32> to vector<8x512xf32>
    %130 = arith.truncf %128 : vector<8x128xf32> to vector<8x128xbf16>
    %cst_23 = arith.constant dense<0.000000e+00> : vector<8x512xf32>
    %131 = tpu.matmul %130, %6, %cst_23 {dimension_numbers = #tpu.dot_dimension_numbers<[1], [0], [0], [1], [0, 0, 1, 1], [], []>} : vector<8x128xbf16>, vector<128x512xbf16>, vector<8x512xf32> -> vector<8x512xf32>
    %132 = arith.addf %129, %131 : vector<8x512xf32>
    %133 = vector.extract_strided_slice %132 {offsets = [0, 0], sizes = [8, 384], strides = [1, 1]} : vector<8x512xf32> to vector<8x384xf32>
    %134 = arith.negf %133 : vector<8x384xf32>
    %135 = math.exp %134 : vector<8x384xf32>
    %cst_24 = arith.constant 1.000000e+00 : f32
    %136 = vector.broadcast %cst_24 : f32 to vector<8x384xf32>
    %137 = arith.addf %136, %135 : vector<8x384xf32>
    %138 = arith.divf %136, %137 : vector<8x384xf32>
    %139 = vector.extract_strided_slice %132 {offsets = [0, 384], sizes = [8, 128], strides = [1, 1]} : vector<8x512xf32> to vector<8x128xf32>
    %140 = math.tanh %139 : vector<8x128xf32>
    %141 = vector.extract_strided_slice %138 {offsets = [0, 0], sizes = [8, 128], strides = [1, 1]} : vector<8x384xf32> to vector<8x128xf32>
    %142 = vector.extract_strided_slice %138 {offsets = [0, 128], sizes = [8, 128], strides = [1, 1]} : vector<8x384xf32> to vector<8x128xf32>
    %143 = vector.extract_strided_slice %138 {offsets = [0, 256], sizes = [8, 128], strides = [1, 1]} : vector<8x384xf32> to vector<8x128xf32>
    %144 = arith.mulf %142, %126 : vector<8x128xf32>
    %145 = arith.mulf %141, %140 : vector<8x128xf32>
    %146 = arith.addf %144, %145 : vector<8x128xf32>
    %147 = math.tanh %146 : vector<8x128xf32>
    %148 = arith.mulf %143, %147 : vector<8x128xf32>
    %149 = vector.extract_strided_slice %5 {offsets = [56, 0], sizes = [8, 512], strides = [1, 1]} : vector<64x512xf32> to vector<8x512xf32>
    %150 = arith.truncf %148 : vector<8x128xf32> to vector<8x128xbf16>
    %cst_25 = arith.constant dense<0.000000e+00> : vector<8x512xf32>
    %151 = tpu.matmul %150, %6, %cst_25 {dimension_numbers = #tpu.dot_dimension_numbers<[1], [0], [0], [1], [0, 0, 1, 1], [], []>} : vector<8x128xbf16>, vector<128x512xbf16>, vector<8x512xf32> -> vector<8x512xf32>
    %152 = arith.addf %149, %151 : vector<8x512xf32>
    %153 = vector.extract_strided_slice %152 {offsets = [0, 0], sizes = [8, 384], strides = [1, 1]} : vector<8x512xf32> to vector<8x384xf32>
    %154 = arith.negf %153 : vector<8x384xf32>
    %155 = math.exp %154 : vector<8x384xf32>
    %cst_26 = arith.constant 1.000000e+00 : f32
    %156 = vector.broadcast %cst_26 : f32 to vector<8x384xf32>
    %157 = arith.addf %156, %155 : vector<8x384xf32>
    %158 = arith.divf %156, %157 : vector<8x384xf32>
    %159 = vector.extract_strided_slice %152 {offsets = [0, 384], sizes = [8, 128], strides = [1, 1]} : vector<8x512xf32> to vector<8x128xf32>
    %160 = math.tanh %159 : vector<8x128xf32>
    %161 = vector.extract_strided_slice %158 {offsets = [0, 0], sizes = [8, 128], strides = [1, 1]} : vector<8x384xf32> to vector<8x128xf32>
    %162 = vector.extract_strided_slice %158 {offsets = [0, 128], sizes = [8, 128], strides = [1, 1]} : vector<8x384xf32> to vector<8x128xf32>
    %163 = vector.extract_strided_slice %158 {offsets = [0, 256], sizes = [8, 128], strides = [1, 1]} : vector<8x384xf32> to vector<8x128xf32>
    %164 = arith.mulf %162, %146 : vector<8x128xf32>
    %165 = arith.mulf %161, %160 : vector<8x128xf32>
    %166 = arith.addf %164, %165 : vector<8x128xf32>
    %167 = math.tanh %166 : vector<8x128xf32>
    %168 = arith.mulf %163, %167 : vector<8x128xf32>
    %cst_27 = arith.constant 0.000000e+00 : f32
    %169 = vector.broadcast %cst_27 : f32 to vector<8x128xf32>
    %170 = arith.maximumf %168, %169 : vector<8x128xf32>
    %171 = arith.truncf %170 : vector<8x128xf32> to vector<8x128xbf16>
    %c0_28 = arith.constant 0 : index
    %c0_29 = arith.constant 0 : index
    %172 = vector.load %arg6[%c0_28, %c0_29] : memref<128x128xbf16, #tpu.memory_space<vmem>>, vector<128x128xbf16>
    %cst_30 = arith.constant dense<0.000000e+00> : vector<8x128xf32>
    %173 = tpu.matmul %171, %172, %cst_30 {dimension_numbers = #tpu.dot_dimension_numbers<[1], [0], [0], [1], [0, 0, 1, 1], [], []>} : vector<8x128xbf16>, vector<128x128xbf16>, vector<8x128xf32> -> vector<8x128xf32>
    %c0_31 = arith.constant 0 : index
    %c0_32 = arith.constant 0 : index
    %174 = vector.load %arg7[%c0_31, %c0_32] : memref<1x128xf32, #tpu.memory_space<vmem>>, vector<1x128xf32>
    %175 = vector.broadcast %174 : vector<1x128xf32> to vector<8x128xf32>
    %176 = arith.addf %173, %175 : vector<8x128xf32>
    %cst_33 = arith.constant 0.000000e+00 : f32
    %177 = vector.broadcast %cst_33 : f32 to vector<8x128xf32>
    %178 = arith.maximumf %176, %177 : vector<8x128xf32>
    %179 = arith.truncf %178 : vector<8x128xf32> to vector<8x128xbf16>
    %c0_34 = arith.constant 0 : index
    %c0_35 = arith.constant 0 : index
    %180 = vector.load %arg8[%c0_34, %c0_35] : memref<128x128xbf16, #tpu.memory_space<vmem>>, vector<128x128xbf16>
    %cst_36 = arith.constant dense<0.000000e+00> : vector<8x128xf32>
    %181 = tpu.matmul %179, %180, %cst_36 {dimension_numbers = #tpu.dot_dimension_numbers<[1], [0], [0], [1], [0, 0, 1, 1], [], []>} : vector<8x128xbf16>, vector<128x128xbf16>, vector<8x128xf32> -> vector<8x128xf32>
    %c0_37 = arith.constant 0 : index
    %c0_38 = arith.constant 0 : index
    %182 = vector.load %arg9[%c0_37, %c0_38] : memref<1x128xf32, #tpu.memory_space<vmem>>, vector<1x128xf32>
    %183 = vector.broadcast %182 : vector<1x128xf32> to vector<8x128xf32>
    %184 = arith.addf %181, %183 : vector<8x128xf32>
    %cst_39 = arith.constant 0.000000e+00 : f32
    %185 = vector.broadcast %cst_39 : f32 to vector<8x128xf32>
    %186 = arith.maximumf %184, %185 : vector<8x128xf32>
    %c0_40 = arith.constant 0 : index
    %c0_41 = arith.constant 0 : index
    %187 = vector.load %arg10[%c0_40, %c0_41] : memref<1x128xf32, #tpu.memory_space<vmem>>, vector<1x128xf32>
    %188 = vector.broadcast %187 : vector<1x128xf32> to vector<8x128xf32>
    %189 = arith.mulf %186, %188 : vector<8x128xf32>
    %cst_42 = arith.constant dense<0.000000e+00> : vector<8xf32>
    %190 = vector.multi_reduction <add>, %189, %cst_42 [1] : vector<8x128xf32> to vector<8xf32>
    %191 = vector.shape_cast %190 : vector<8xf32> to vector<8x1xf32>
    %192 = vector.shape_cast %191 : vector<8x1xf32> to vector<8x1xf32>
    %193 = vector.broadcast %192 : vector<8x1xf32> to vector<8x128xf32>
    %c0_43 = arith.constant 0 : index
    %c0_44 = arith.constant 0 : index
    %194 = vector.load %arg11[%c0_43, %c0_44] : memref<1x128xf32, #tpu.memory_space<vmem>>, vector<1x128xf32>
    %195 = vector.broadcast %194 : vector<1x128xf32> to vector<8x128xf32>
    %196 = arith.addf %193, %195 : vector<8x128xf32>
    %c0_45 = arith.constant 0 : index
    %c0_46 = arith.constant 0 : index
    %197 = vector.load %arg12[%c0_45, %c0_46] : memref<8x128xf32, #tpu.memory_space<vmem>>, vector<8x128xf32>
    tpu.vector_store %arg12[%c0_45, %c0_46], %196 {strides = array<i32>} : memref<8x128xf32, #tpu.memory_space<vmem>>, vector<8x128xf32>,
    return
  }
}

</mosaic_0001>

<llo_original>
// kernel: _lstm1_forward_impl.1
$region0: #{_lstm1_forward_impl.1}
  #allocation0 [shape = 'u32[]', space=smem, size = 0x4, offset = 0x4, fixed_abs, tag = 'smem constant byte address 0x4 - core index']
  #allocation1 [shape = 'u32[144,128]{1,0:T(1,128)}', space=vmem, size = 0x12000, scoped, tag = 'internal scratch']
  %s0 = inlined_call_operand.vmem [shape: bf16[64,25], index: 0, kind: input, shape index: {}]
  %s1 = inlined_call_operand.vmem [shape: f32[8,128], index: 1, kind: input, shape index: {}]
  %s2 = inlined_call_operand.vmem [shape: f32[8,128], index: 2, kind: input, shape index: {}]
  %s3 = inlined_call_operand.vmem [shape: bf16[25,512], index: 3, kind: input, shape index: {}]
  %s4 = inlined_call_operand.hbm [shape: bf16[128,512], index: 4, kind: input, shape index: {}]
  %s5 = inlined_call_operand.vmem [shape: f32[1,512], index: 5, kind: input, shape index: {}]
  %s6 = inlined_call_operand.vmem [shape: bf16[128,128], index: 6, kind: input, shape index: {}]
  %s7 = inlined_call_operand.vmem [shape: f32[1,128], index: 7, kind: input, shape index: {}]
  %s8 = inlined_call_operand.hbm [shape: bf16[128,128], index: 8, kind: input, shape index: {}]
  %s9 = inlined_call_operand.vmem [shape: f32[1,128], index: 9, kind: input, shape index: {}]
  %s10 = inlined_call_operand.vmem [shape: f32[1,128], index: 10, kind: input, shape index: {}]
  %s11 = inlined_call_operand.vmem [shape: f32[1,128], index: 11, kind: input, shape index: {}]
  %s12 = inlined_call_operand.vmem [shape: f32[8,128], index: 12, kind: output, shape index: {}]
  %s13 = sld [smem:[#allocation0]]
  $region66: #{_lstm1_forward_impl.1} parent=0
    _
  %s15 = ssub.s32 1, %s13
  %s16 = scalar_select 0, %s15, %s13
  $region1: #{_lstm1_forward_impl.1} parent=0
    #allocation2 [shape = 'u8[131072]{0}', space=vmem, size = 0x20000, scoped, tag = 'input window, operand 4, single buffered']
    #allocation3 [shape = 's32[1]{0}', space=sflag, size = 0x4, scoped, tag = 'scoped memory for _lstm1_forward_impl.1']
    #allocation4 [shape = 'u8[32768]{0}', space=vmem, size = 0x8000, scoped, tag = 'input window, operand 8, single buffered']
    #allocation5 [shape = 's32[1]{0}', space=sflag, size = 0x4, scoped, tag = 'scoped memory for _lstm1_forward_impl.1']
    %17 = vsyncpa [#allocation3], 0
    %18 = vsyncpa [#allocation5], 0
    // Predicated region
    $region2: #{_lstm1_forward_impl.1} parent=1 // pred_check
      _
    $region3: #{_lstm1_forward_impl.1} parent=1 // pred_check_branch
      %20 = sbr.rel (0) target = $region5
    $region4: #{_lstm1_forward_impl.1} parent=1 // pred_region
      _
    $region5: #{_lstm1_forward_impl.1} parent=1 // pred_fallthru
      _
    // Predicated region
    $region6: #{_lstm1_forward_impl.1} parent=1 // pred_check
      _
    $region7: #{_lstm1_forward_impl.1} parent=1 // pred_check_branch
      %22 = sbr.rel (0) target = $region9
    $region8: #{_lstm1_forward_impl.1} parent=1 // pred_region
      _
    $region9: #{_lstm1_forward_impl.1} parent=1 // pred_fallthru
      _
    // Predicated region
    $region10: #{_lstm1_forward_impl.1} parent=1 // pred_check
      _
    $region11: #{_lstm1_forward_impl.1} parent=1 // pred_check_branch
      %24 = sbr.rel (0) target = $region13
    $region12: #{_lstm1_forward_impl.1} parent=1 // pred_region
      _
    $region13: #{_lstm1_forward_impl.1} parent=1 // pred_fallthru
      _
    // Predicated region
    $region14: #{_lstm1_forward_impl.1} parent=1 // pred_check
      _
    $region15: #{_lstm1_forward_impl.1} parent=1 // pred_check_branch
      %26 = sbr.rel (0) target = $region17
    $region16: #{_lstm1_forward_impl.1} parent=1 // pred_region
      _
    $region17: #{_lstm1_forward_impl.1} parent=1 // pred_fallthru
      _
    // Predicated region
    $region18: #{_lstm1_forward_impl.1} parent=1 // pred_check
      _
    $region19: #{_lstm1_forward_impl.1} parent=1 // pred_check_branch
      %28 = sbr.rel (0) target = $region21
    $region20: #{_lstm1_forward_impl.1} parent=1 // pred_region
      %s30 = ssub.s32 4096, 4096
      %31 = vsyncadd [#allocation3], %s30
      %s32 = sshll.u32 [#allocation2], 4
      %s33 = int_to_ptr.vmem [resolvable:$true] %s32
      %38 = dma.hbm_to_vmem [thread:$0]  %s4, 4096, %s33, [#allocation3], 256, 256, 16
    $region21: #{_lstm1_forward_impl.1} parent=1 // pred_fallthru
      _
    // Predicated region
    $region22: #{_lstm1_forward_impl.1} parent=1 // pred_check
      _
    $region23: #{_lstm1_forward_impl.1} parent=1 // pred_check_branch
      %40 = sbr.rel (0) target = $region25
    $region24: #{_lstm1_forward_impl.1} parent=1 // pred_region
      _
    $region25: #{_lstm1_forward_impl.1} parent=1 // pred_fallthru
      _
    // Predicated region
    $region26: #{_lstm1_forward_impl.1} parent=1 // pred_check
      _
    $region27: #{_lstm1_forward_impl.1} parent=1 // pred_check_branch
      %42 = sbr.rel (0) target = $region29
    $region28: #{_lstm1_forward_impl.1} parent=1 // pred_region
      _
    $region29: #{_lstm1_forward_impl.1} parent=1 // pred_fallthru
      _
    // Predicated region
    $region30: #{_lstm1_forward_impl.1} parent=1 // pred_check
      _
    $region31: #{_lstm1_forward_impl.1} parent=1 // pred_check_branch
      %44 = sbr.rel (0) target = $region33
    $region32: #{_lstm1_forward_impl.1} parent=1 // pred_region
      _
    $region33: #{_lstm1_forward_impl.1} parent=1 // pred_fallthru
      _
    // Predicated region
    $region34: #{_lstm1_forward_impl.1} parent=1 // pred_check
      _
    $region35: #{_lstm1_forward_impl.1} parent=1 // pred_check_branch
      %46 = sbr.rel (0) target = $region37
    $region36: #{_lstm1_forward_impl.1} parent=1 // pred_region
      %s48 = ssub.s32 1024, 1024
      %49 = vsyncadd [#allocation5], %s48
      %s50 = sshll.u32 [#allocation4], 4
      %s51 = int_to_ptr.vmem [resolvable:$true] %s50
      %56 = dma.hbm_to_vmem [thread:$0]  %s8, 1024, %s51, [#allocation5], 64, 64, 4
    $region37: #{_lstm1_forward_impl.1} parent=1 // pred_fallthru
      _
    // Predicated region
    $region38: #{_lstm1_forward_impl.1} parent=1 // pred_check
      _
    $region39: #{_lstm1_forward_impl.1} parent=1 // pred_check_branch
      %58 = sbr.rel (0) target = $region41
    $region40: #{_lstm1_forward_impl.1} parent=1 // pred_region
      _
    $region41: #{_lstm1_forward_impl.1} parent=1 // pred_fallthru
      _
    // Predicated region
    $region42: #{_lstm1_forward_impl.1} parent=1 // pred_check
      _
    $region43: #{_lstm1_forward_impl.1} parent=1 // pred_check_branch
      %60 = sbr.rel (0) target = $region45
    $region44: #{_lstm1_forward_impl.1} parent=1 // pred_region
      _
    $region45: #{_lstm1_forward_impl.1} parent=1 // pred_fallthru
      _
    // Predicated region
    $region46: #{_lstm1_forward_impl.1} parent=1 // pred_check
      _
    $region47: #{_lstm1_forward_impl.1} parent=1 // pred_check_branch
      %62 = sbr.rel (0) target = $region49
    $region48: #{_lstm1_forward_impl.1} parent=1 // pred_region
      _
    $region49: #{_lstm1_forward_impl.1} parent=1 // pred_fallthru
      _
    // Predicated region
    $region50: #{_lstm1_forward_impl.1} parent=1 // pred_check
      _
    $region51: #{_lstm1_forward_impl.1} parent=1 // pred_check_branch
      %64 = sbr.rel (0) target = $region53
    $region52: #{_lstm1_forward_impl.1} parent=1 // pred_region
      %65 = dma.done [#allocation3], 4096
    $region53: #{_lstm1_forward_impl.1} parent=1 // pred_fallthru
      _
    // Predicated region
    $region54: #{_lstm1_forward_impl.1} parent=1 // pred_check
      _
    $region55: #{_lstm1_forward_impl.1} parent=1 // pred_check_branch
      %67 = sbr.rel (0) target = $region57
    $region56: #{_lstm1_forward_impl.1} parent=1 // pred_region
      %68 = dma.done [#allocation5], 1024
    $region57: #{_lstm1_forward_impl.1} parent=1 // pred_fallthru
      _
    %v70 = vld [vmem:[%s0] sm:$0xf]
    %v71 = vld [vmem:[%s0 + $0x4] sm:$0xf]
    %v72 = vld [vmem:[%s0 + $0x8] sm:$0xf]
    %v73 = vld [vmem:[%s0 + $0xc] sm:$0xf]
    %v74 = vld [vmem:[%s0 + $0x10] sm:$0xf]
    %v75 = vld [vmem:[%s0 + $0x14] sm:$0xf]
    %v76 = vld [vmem:[%s0 + $0x18] sm:$0xf]
    %v77 = vld [vmem:[%s0 + $0x1c] sm:$0xf]
    %v78 = vld [vmem:[%s3] sm:$0xff]
    %v79 = vld [vmem:[%s3 + $0x8] sm:$0xff]
    %v80 = vld [vmem:[%s3 + $0x10] sm:$0xff]
    %v81 = vld [vmem:[%s3 + $0x18] sm:$0xff]
    %v82 = vld [vmem:[%s3 + $0x20] sm:$0xff]
    %v83 = vld [vmem:[%s3 + $0x28] sm:$0xff]
    %v84 = vld [vmem:[%s3 + $0x30] sm:$0x11]
    %v85 = vld [vmem:[%s3 + $0x38] sm:$0x11]
    %v86 = vld [vmem:[%s5] sm:$0xf]
    %v88 = vlaneseq
    %v89 = vshrl.u32 %v88, 7
    %v90 = vsub.s32 0, %v89
    %v91 = vrot.slane %v86, %v90
    %v92 = vlaneseq
    %v93 = vshrl.u32 %v92, 7
    %v94 = vsub.s32 1, %v93
    %v95 = vrot.slane %v86, %v94
    %v96 = vlaneseq
    %v97 = vshrl.u32 %v96, 7
    %v98 = vsub.s32 2, %v97
    %v99 = vrot.slane %v86, %v98
    %v100 = vlaneseq
    %v101 = vshrl.u32 %v100, 7
    %v102 = vsub.s32 3, %v101
    %v103 = vrot.slane %v86, %v102
    %v116 = vunpack.c.l.b16 %v70
    %v117 = vunpack.c.l.b16 %v71
    %v118 = vunpack.c.l.b16 %v72
    %v119 = vunpack.c.l.b16 %v73
    %v120 = vunpack.c.l.b16 %v74
    %v121 = vunpack.c.l.b16 %v75
    %v122 = vunpack.c.l.b16 %v76
    %v123 = vunpack.c.l.b16 %v77
    %v124 = vpack.c.b16 %v117, %v116
    %v125 = vpack.c.b16 %v119, %v118
    %v126 = vpack.c.b16 %v121, %v120
    %v127 = vpack.c.b16 %v123, %v122
    %v136 = vunpack.c.l.b16 %v78
    %v137 = vunpack.c.h.b16 %v78
    %v138 = vunpack.c.l.b16 %v79
    %v139 = vunpack.c.h.b16 %v79
    %v140 = vunpack.c.l.b16 %v80
    %v141 = vunpack.c.h.b16 %v80
    %v142 = vunpack.c.l.b16 %v81
    %v143 = vunpack.c.h.b16 %v81
    %v144 = vunpack.c.l.b16 %v82
    %v145 = vunpack.c.h.b16 %v82
    %v146 = vunpack.c.l.b16 %v83
    %v147 = vunpack.c.h.b16 %v83
    %v148 = vunpack.c.l.b16 %v84
    %v149 = vunpack.c.h.b16 %v84
    %v150 = vunpack.c.l.b16 %v85
    %v151 = vunpack.c.h.b16 %v85
    %v152 = vpack.c.b16 %v140, %v136
    %v153 = vpack.c.b16 %v141, %v137
    %v154 = vpack.c.b16 %v142, %v138
    %v155 = vpack.c.b16 %v143, %v139
    %v156 = vpack.c.b16 %v148, %v144
    %v157 = vpack.c.b16 %v149, %v145
    %v158 = vpack.c.b16 %v150, %v146
    %v159 = vpack.c.b16 %v151, %v147
    %vm164 = vcmask 203776
    %v166 = vsel %vm164, %v124, 0
    %v169 = vsel %vm164, %v125, 0
    %v172 = vsel %vm164, %v126, 0
    %v175 = vsel %vm164, %v127, 0
    %vm177 = vcmask 1043456
    %vm178 = vcmask 1044480
    %v179 = vsel %vm177, 4294967295, 65535
    %v180 = vsel %vm178, %v179, 0
    %v182 = vand.u32 %v156, %v180
    %v185 = vand.u32 %v157, %v180
    %v188 = vand.u32 %v158, %v180
    %v191 = vand.u32 %v159, %v180
    %193 = vmatprep.subr.bf16.mxu0 0
    %194 = vmatpush1.bf16.msra.mxu0 0
    %195 = vmatprep.subr.bf16.mxu0 0
    %196 = vmatpush1.bf16.msra.mxu0 0
    %197 = vmatprep.subr.bf16.mxu0 0
    %198 = vmatpush1.bf16.msra.mxu0 0
    %199 = vmatprep.subr.bf16.mxu0 0
    %200 = vmatpush1.bf16.msra.mxu0 0
    %201 = vmatprep.subr.bf16.mxu0 0
    %202 = vmatpush1.bf16.msra.mxu0 0
    %203 = vmatprep.subr.bf16.mxu0 0
    %204 = vmatpush1.bf16.msra.mxu0 0
    %205 = vmatprep.subr.bf16.mxu0 %v185
    %206 = vmatpush1.bf16.msra.mxu0 %v182
    %207 = vmatprep.subr.bf16.mxu0 %v153
    %208 = vmatpush1.bf16.msra.mxu0 %v152
    %209 = vmatprep.subr.bf16.mxu0 0
    %210 = vmatpush2.bf16.msra.mxu0 0
    %211 = vmatprep.subr.bf16.mxu0 0
    %212 = vmatpush2.bf16.msra.mxu0 0
    %213 = vmatprep.subr.bf16.mxu0 0
    %214 = vmatpush2.bf16.msra.mxu0 0
    %215 = vmatprep.subr.bf16.mxu0 0
    %216 = vmatpush2.bf16.msra.mxu0 0
    %217 = vmatprep.subr.bf16.mxu0 0
    %218 = vmatpush2.bf16.msra.mxu0 0
    %219 = vmatprep.subr.bf16.mxu0 0
    %220 = vmatpush2.bf16.msra.mxu0 0
    %221 = vmatprep.subr.bf16.mxu0 0
    %222 = vmatpush2.bf16.msra.mxu0 0
    %223 = vmatprep.subr.bf16.mxu0 0
    %224 = vmatpush2.bf16.msra.mxu0 0
    %225 = vmatprep.mubr.bf16.mxu0 0
    %226 = vmatmul.mubr.bf16.gmra.mxu0 %v166
    %v227 = vpop.f32.mrf.mxu0
    %v228 = vadd.f32 %v91, %v227
    %v229 = vpop.f32.mrf.mxu0
    %v230 = vadd.f32 %v95, %v229
    %v231 = vpop.f32.mrf.mxu0
    %v232 = vadd.f32 %v91, %v231
    %v233 = vpop.f32.mrf.mxu0
    %v234 = vadd.f32 %v95, %v233
    %235 = vmatprep.mubr.bf16.mxu0 0
    %236 = vmatmul.mubr.bf16.gmra.mxu0 %v169
    %v237 = vpop.f32.mrf.mxu0
    %v238 = vadd.f32 %v91, %v237
    %v239 = vpop.f32.mrf.mxu0
    %v240 = vadd.f32 %v95, %v239
    %v241 = vpop.f32.mrf.mxu0
    %v242 = vadd.f32 %v91, %v241
    %v243 = vpop.f32.mrf.mxu0
    %v244 = vadd.f32 %v95, %v243
    %245 = vmatprep.mubr.bf16.mxu0 0
    %246 = vmatmul.mubr.bf16.gmra.mxu0 %v172
    %v247 = vpop.f32.mrf.mxu0
    %v248 = vadd.f32 %v91, %v247
    %v249 = vpop.f32.mrf.mxu0
    %v250 = vadd.f32 %v95, %v249
    %v251 = vpop.f32.mrf.mxu0
    %v252 = vadd.f32 %v91, %v251
    %v253 = vpop.f32.mrf.mxu0
    %v254 = vadd.f32 %v95, %v253
    %255 = vmatprep.mubr.bf16.mxu0 0
    %256 = vmatmul.mubr.bf16.gmra.mxu0 %v175
    %v257 = vpop.f32.mrf.mxu0
    %v258 = vadd.f32 %v91, %v257
    %v259 = vpop.f32.mrf.mxu0
    %v260 = vadd.f32 %v95, %v259
    %v261 = vpop.f32.mrf.mxu0
    %v262 = vadd.f32 %v91, %v261
    %v263 = vpop.f32.mrf.mxu0
    %v264 = vadd.f32 %v95, %v263
    %265 = vdwg.mxu0
    %266 = vmatprep.subr.bf16.mxu0 0
    %267 = vmatpush1.bf16.msra.mxu0 0
    %268 = vmatprep.subr.bf16.mxu0 0
    %269 = vmatpush1.bf16.msra.mxu0 0
    %270 = vmatprep.subr.bf16.mxu0 0
    %271 = vmatpush1.bf16.msra.mxu0 0
    %272 = vmatprep.subr.bf16.mxu0 0
    %273 = vmatpush1.bf16.msra.mxu0 0
    %274 = vmatprep.subr.bf16.mxu0 0
    %275 = vmatpush1.bf16.msra.mxu0 0
    %276 = vmatprep.subr.bf16.mxu0 0
    %277 = vmatpush1.bf16.msra.mxu0 0
    %278 = vmatprep.subr.bf16.mxu0 %v191
    %279 = vmatpush1.bf16.msra.mxu0 %v188
    %280 = vmatprep.subr.bf16.mxu0 %v155
    %281 = vmatpush1.bf16.msra.mxu0 %v154
    %282 = vmatprep.subr.bf16.mxu0 0
    %283 = vmatpush2.bf16.msra.mxu0 0
    %284 = vmatprep.subr.bf16.mxu0 0
    %285 = vmatpush2.bf16.msra.mxu0 0
    %286 = vmatprep.subr.bf16.mxu0 0
    %287 = vmatpush2.bf16.msra.mxu0 0
    %288 = vmatprep.subr.bf16.mxu0 0
    %289 = vmatpush2.bf16.msra.mxu0 0
    %290 = vmatprep.subr.bf16.mxu0 0
    %291 = vmatpush2.bf16.msra.mxu0 0
    %292 = vmatprep.subr.bf16.mxu0 0
    %293 = vmatpush2.bf16.msra.mxu0 0
    %294 = vmatprep.subr.bf16.mxu0 0
    %295 = vmatpush2.bf16.msra.mxu0 0
    %296 = vmatprep.subr.bf16.mxu0 0
    %297 = vmatpush2.bf16.msra.mxu0 0
    %298 = vmatprep.mubr.bf16.mxu0 0
    %299 = vmatmul.mubr.bf16.gmra.mxu0 %v166
    %v300 = vpop.f32.mrf.mxu0
    %v301 = vadd.f32 %v99, %v300
    %v302 = vpop.f32.mrf.mxu0
    %v303 = vadd.f32 %v103, %v302
    %v304 = vpop.f32.mrf.mxu0
    %v305 = vadd.f32 %v99, %v304
    %v306 = vpop.f32.mrf.mxu0
    %v307 = vadd.f32 %v103, %v306
    %308 = vmatprep.mubr.bf16.mxu0 0
    %309 = vmatmul.mubr.bf16.gmra.mxu0 %v169
    %v310 = vpop.f32.mrf.mxu0
    %v311 = vadd.f32 %v99, %v310
    %v312 = vpop.f32.mrf.mxu0
    %v313 = vadd.f32 %v103, %v312
    %v314 = vpop.f32.mrf.mxu0
    %v315 = vadd.f32 %v99, %v314
    %v316 = vpop.f32.mrf.mxu0
    %v317 = vadd.f32 %v103, %v316
    %318 = vmatprep.mubr.bf16.mxu0 0
    %319 = vmatmul.mubr.bf16.gmra.mxu0 %v172
    %v320 = vpop.f32.mrf.mxu0
    %v321 = vadd.f32 %v99, %v320
    %v322 = vpop.f32.mrf.mxu0
    %v323 = vadd.f32 %v103, %v322
    %v324 = vpop.f32.mrf.mxu0
    %v325 = vadd.f32 %v99, %v324
    %v326 = vpop.f32.mrf.mxu0
    %v327 = vadd.f32 %v103, %v326
    %328 = vmatprep.mubr.bf16.mxu0 0
    %329 = vmatmul.mubr.bf16.gmra.mxu0 %v175
    %v330 = vpop.f32.mrf.mxu0
    %v331 = vadd.f32 %v99, %v330
    %v332 = vpop.f32.mrf.mxu0
    %v333 = vadd.f32 %v103, %v332
    %v334 = vpop.f32.mrf.mxu0
    %v335 = vadd.f32 %v99, %v334
    %v336 = vpop.f32.mrf.mxu0
    %v337 = vadd.f32 %v103, %v336
    %338 = vdwg.mxu0
    %v339 = vld [vmem:[#allocation2] sm:$0xff]
    %v340 = vld [vmem:[#allocation2 + $0x8] sm:$0xff]
    %v341 = vld [vmem:[#allocation2 + $0x10] sm:$0xff]
    %v342 = vld [vmem:[#allocation2 + $0x18] sm:$0xff]
    %v343 = vld [vmem:[#allocation2 + $0x20] sm:$0xff]
    %v344 = vld [vmem:[#allocation2 + $0x28] sm:$0xff]
    %v345 = vld [vmem:[#allocation2 + $0x30] sm:$0xff]
    %v346 = vld [vmem:[#allocation2 + $0x38] sm:$0xff]
    %v347 = vld [vmem:[#allocation2 + $0x40] sm:$0xff]
    %v348 = vld [vmem:[#allocation2 + $0x48] sm:$0xff]
    %v349 = vld [vmem:[#allocation2 + $0x50] sm:$0xff]
    %v350 = vld [vmem:[#allocation2 + $0x58] sm:$0xff]
    %v351 = vld [vmem:[#allocation2 + $0x60] sm:$0xff]
    %v352 = vld [vmem:[#allocation2 + $0x68] sm:$0xff]
    %v353 = vld [vmem:[#allocation2 + $0x70] sm:$0xff]
    %v354 = vld [vmem:[#allocation2 + $0x78] sm:$0xff]
    %v355 = vld [vmem:[#allocation2 + $0x80] sm:$0xff]
    %v356 = vld [vmem:[#allocation2 + $0x88] sm:$0xff]
    %v357 = vld [vmem:[#allocation2 + $0x90] sm:$0xff]
    %v358 = vld [vmem:[#allocation2 + $0x98] sm:$0xff]
    %v359 = vld [vmem:[#allocation2 + $0xa0] sm:$0xff]
    %v360 = vld [vmem:[#allocation2 + $0xa8] sm:$0xff]
    %v361 = vld [vmem:[#allocation2 + $0xb0] sm:$0xff]
    %v362 = vld [vmem:[#allocation2 + $0xb8] sm:$0xff]
    %v363 = vld [vmem:[#allocation2 + $0xc0] sm:$0xff]
    %v364 = vld [vmem:[#allocation2 + $0xc8] sm:$0xff]
    %v365 = vld [vmem:[#allocation2 + $0xd0] sm:$0xff]
    %v366 = vld [vmem:[#allocation2 + $0xd8] sm:$0xff]
    %v367 = vld [vmem:[#allocation2 + $0xe0] sm:$0xff]
    %v368 = vld [vmem:[#allocation2 + $0xe8] sm:$0xff]
    %v369 = vld [vmem:[#allocation2 + $0xf0] sm:$0xff]
    %v370 = vld [vmem:[#allocation2 + $0xf8] sm:$0xff]
    %v371 = vld [vmem:[%s1] sm:$0xff]
    %v372 = vld [vmem:[%s2] sm:$0xff]
    %v373 = vpack.c.bf16 %v371, %v371
    %v406 = vunpack.c.l.b16 %v339
    %v407 = vunpack.c.h.b16 %v339
    %v408 = vunpack.c.l.b16 %v340
    %v409 = vunpack.c.h.b16 %v340
    %v410 = vunpack.c.l.b16 %v341
    %v411 = vunpack.c.h.b16 %v341
    %v412 = vunpack.c.l.b16 %v342
    %v413 = vunpack.c.h.b16 %v342
    %v414 = vunpack.c.l.b16 %v343
    %v415 = vunpack.c.h.b16 %v343
    %v416 = vunpack.c.l.b16 %v344
    %v417 = vunpack.c.h.b16 %v344
    %v418 = vunpack.c.l.b16 %v345
    %v419 = vunpack.c.h.b16 %v345
    %v420 = vunpack.c.l.b16 %v346
    %v421 = vunpack.c.h.b16 %v346
    %v422 = vunpack.c.l.b16 %v347
    %v423 = vunpack.c.h.b16 %v347
    %v424 = vunpack.c.l.b16 %v348
    %v425 = vunpack.c.h.b16 %v348
    %v426 = vunpack.c.l.b16 %v349
    %v427 = vunpack.c.h.b16 %v349
    %v428 = vunpack.c.l.b16 %v350
    %v429 = vunpack.c.h.b16 %v350
    %v430 = vunpack.c.l.b16 %v351
    %v431 = vunpack.c.h.b16 %v351
    %v432 = vunpack.c.l.b16 %v352
    %v433 = vunpack.c.h.b16 %v352
    %v434 = vunpack.c.l.b16 %v353
    %v435 = vunpack.c.h.b16 %v353
    %v436 = vunpack.c.l.b16 %v354
    %v437 = vunpack.c.h.b16 %v354
    %v438 = vunpack.c.l.b16 %v355
    %v439 = vunpack.c.h.b16 %v355
    %v440 = vunpack.c.l.b16 %v356
    %v441 = vunpack.c.h.b16 %v356
    %v442 = vunpack.c.l.b16 %v357
    %v443 = vunpack.c.h.b16 %v357
    %v444 = vunpack.c.l.b16 %v358
    %v445 = vunpack.c.h.b16 %v358
    %v446 = vunpack.c.l.b16 %v359
    %v447 = vunpack.c.h.b16 %v359
    %v448 = vunpack.c.l.b16 %v360
    %v449 = vunpack.c.h.b16 %v360
    %v450 = vunpack.c.l.b16 %v361
    %v451 = vunpack.c.h.b16 %v361
    %v452 = vunpack.c.l.b16 %v362
    %v453 = vunpack.c.h.b16 %v362
    %v454 = vunpack.c.l.b16 %v363
    %v455 = vunpack.c.h.b16 %v363
    %v456 = vunpack.c.l.b16 %v364
    %v457 = vunpack.c.h.b16 %v364
    %v458 = vunpack.c.l.b16 %v365
    %v459 = vunpack.c.h.b16 %v365
    %v460 = vunpack.c.l.b16 %v366
    %v461 = vunpack.c.h.b16 %v366
    %v462 = vunpack.c.l.b16 %v367
    %v463 = vunpack.c.h.b16 %v367
    %v464 = vunpack.c.l.b16 %v368
    %v465 = vunpack.c.h.b16 %v368
    %v466 = vunpack.c.l.b16 %v369
    %v467 = vunpack.c.h.b16 %v369
    %v468 = vunpack.c.l.b16 %v370
    %v469 = vunpack.c.h.b16 %v370
    %v470 = vpack.c.b16 %v410, %v406
    %v471 = vpack.c.b16 %v411, %v407
    %v472 = vpack.c.b16 %v412, %v408
    %v473 = vpack.c.b16 %v413, %v409
    %v474 = vpack.c.b16 %v418, %v414
    %v475 = vpack.c.b16 %v419, %v415
    %v476 = vpack.c.b16 %v420, %v416
    %v477 = vpack.c.b16 %v421, %v417
    %v478 = vpack.c.b16 %v426, %v422
    %v479 = vpack.c.b16 %v427, %v423
    %v480 = vpack.c.b16 %v428, %v424
    %v481 = vpack.c.b16 %v429, %v425
    %v482 = vpack.c.b16 %v434, %v430
    %v483 = vpack.c.b16 %v435, %v431
    %v484 = vpack.c.b16 %v436, %v432
    %v485 = vpack.c.b16 %v437, %v433
    %v486 = vpack.c.b16 %v442, %v438
    %v487 = vpack.c.b16 %v443, %v439
    %v488 = vpack.c.b16 %v444, %v440
    %v489 = vpack.c.b16 %v445, %v441
    %v490 = vpack.c.b16 %v450, %v446
    %v491 = vpack.c.b16 %v451, %v447
    %v492 = vpack.c.b16 %v452, %v448
    %v493 = vpack.c.b16 %v453, %v449
    %v494 = vpack.c.b16 %v458, %v454
    %v495 = vpack.c.b16 %v459, %v455
    %v496 = vpack.c.b16 %v460, %v456
    %v497 = vpack.c.b16 %v461, %v457
    %v498 = vpack.c.b16 %v466, %v462
    %v499 = vpack.c.b16 %v467, %v463
    %v500 = vpack.c.b16 %v468, %v464
    %v501 = vpack.c.b16 %v469, %v465
    %534 = vmatprep.subr.bf16.mxu0 %v499
    %535 = vmatpush1.bf16.msra.mxu0 %v498
    %536 = vmatprep.subr.bf16.mxu0 %v495
    %537 = vmatpush1.bf16.msra.mxu0 %v494
    %538 = vmatprep.subr.bf16.mxu0 %v491
    %539 = vmatpush1.bf16.msra.mxu0 %v490
    %540 = vmatprep.subr.bf16.mxu0 %v487
    %541 = vmatpush1.bf16.msra.mxu0 %v486
    %542 = vmatprep.subr.bf16.mxu0 %v483
    %543 = vmatpush1.bf16.msra.mxu0 %v482
    %544 = vmatprep.subr.bf16.mxu0 %v479
    %545 = vmatpush1.bf16.msra.mxu0 %v478
    %546 = vmatprep.subr.bf16.mxu0 %v475
    %547 = vmatpush1.bf16.msra.mxu0 %v474
    %548 = vmatprep.subr.bf16.mxu0 %v471
    %549 = vmatpush1.bf16.msra.mxu0 %v470
    %550 = vmatprep.subr.bf16.mxu0 0
    %551 = vmatpush2.bf16.msra.mxu0 0
    %552 = vmatprep.subr.bf16.mxu0 0
    %553 = vmatpush2.bf16.msra.mxu0 0
    %554 = vmatprep.subr.bf16.mxu0 0
    %555 = vmatpush2.bf16.msra.mxu0 0
    %556 = vmatprep.subr.bf16.mxu0 0
    %557 = vmatpush2.bf16.msra.mxu0 0
    %558 = vmatprep.subr.bf16.mxu0 0
    %559 = vmatpush2.bf16.msra.mxu0 0
    %560 = vmatprep.subr.bf16.mxu0 0
    %561 = vmatpush2.bf16.msra.mxu0 0
    %562 = vmatprep.subr.bf16.mxu0 0
    %563 = vmatpush2.bf16.msra.mxu0 0
    %564 = vmatprep.subr.bf16.mxu0 0
    %565 = vmatpush2.bf16.msra.mxu0 0
    %566 = vmatprep.mubr.bf16.mxu0 0
    %567 = vmatmul.mubr.bf16.gmra.mxu0 %v373
    %v568 = vpop.f32.mrf.mxu0
    %v569 = vadd.f32 0.0, %v568
    %v570 = vpop.f32.mrf.mxu0
    %v571 = vadd.f32 0.0, %v570
    %v572 = vpop.f32.mrf.mxu0
    %v573 = vpop.f32.mrf.mxu0
    %574 = vdwg.mxu0
    %575 = vmatprep.subr.bf16.mxu0 %v501
    %576 = vmatpush1.bf16.msra.mxu0 %v500
    %577 = vmatprep.subr.bf16.mxu0 %v497
    %578 = vmatpush1.bf16.msra.mxu0 %v496
    %579 = vmatprep.subr.bf16.mxu0 %v493
    %580 = vmatpush1.bf16.msra.mxu0 %v492
    %581 = vmatprep.subr.bf16.mxu0 %v489
    %582 = vmatpush1.bf16.msra.mxu0 %v488
    %583 = vmatprep.subr.bf16.mxu0 %v485
    %584 = vmatpush1.bf16.msra.mxu0 %v484
    %585 = vmatprep.subr.bf16.mxu0 %v481
    %586 = vmatpush1.bf16.msra.mxu0 %v480
    %587 = vmatprep.subr.bf16.mxu0 %v477
    %588 = vmatpush1.bf16.msra.mxu0 %v476
    %589 = vmatprep.subr.bf16.mxu0 %v473
    %590 = vmatpush1.bf16.msra.mxu0 %v472
    %591 = vmatprep.subr.bf16.mxu0 0
    %592 = vmatpush2.bf16.msra.mxu0 0
    %593 = vmatprep.subr.bf16.mxu0 0
    %594 = vmatpush2.bf16.msra.mxu0 0
    %595 = vmatprep.subr.bf16.mxu0 0
    %596 = vmatpush2.bf16.msra.mxu0 0
    %597 = vmatprep.subr.bf16.mxu0 0
    %598 = vmatpush2.bf16.msra.mxu0 0
    %599 = vmatprep.subr.bf16.mxu0 0
    %600 = vmatpush2.bf16.msra.mxu0 0
    %601 = vmatprep.subr.bf16.mxu0 0
    %602 = vmatpush2.bf16.msra.mxu0 0
    %603 = vmatprep.subr.bf16.mxu0 0
    %604 = vmatpush2.bf16.msra.mxu0 0
    %605 = vmatprep.subr.bf16.mxu0 0
    %606 = vmatpush2.bf16.msra.mxu0 0
    %607 = vmatprep.mubr.bf16.mxu0 0
    %608 = vmatmul.mubr.bf16.gmra.mxu0 %v373
    %v609 = vpop.f32.mrf.mxu0
    %v610 = vadd.f32 0.0, %v609
    %v611 = vpop.f32.mrf.mxu0
    %v612 = vadd.f32 0.0, %v611
    %v613 = vpop.f32.mrf.mxu0
    %v614 = vpop.f32.mrf.mxu0
    %615 = vdwg.mxu0
    %v616 = vadd.f32 %v228, %v569
    %v617 = vadd.f32 %v230, %v571
    %v618 = vadd.f32 %v301, %v610
    %v619 = vadd.f32 %v303, %v612
    %v620 = vxor.u32 %v616, 2147483648
    %v621 = vxor.u32 %v617, 2147483648
    %v622 = vxor.u32 %v618, 2147483648
    %v623 = vmul.f32 %v620, 1.442695
    %v624 = vpow.pop %v623
    %v625 = vmul.f32 %v621, 1.442695
    %v626 = vpow.pop %v625
    %v627 = vmul.f32 %v622, 1.442695
    %v628 = vpow.pop %v627
    %v629 = vadd.f32 %v624, 1.0
    %v630 = vadd.f32 %v626, 1.0
    %v631 = vadd.f32 %v628, 1.0
    %v632 = vrcp.pop %v629
    %v633 = vmul.f32 1.0, %v632
    %v634 = vrcp.pop %v630
    %v635 = vmul.f32 1.0, %v634
    %v636 = vrcp.pop %v631
    %v637 = vmul.f32 1.0, %v636
    %v638 = vtanh.pop %v619
    %v639 = vmul.f32 %v635, %v372
    %v640 = vmul.f32 %v633, %v638
    %v641 = vadd.f32 %v639, %v640
    %v642 = vtanh.pop %v641
    %v643 = vmul.f32 %v637, %v642
    %v644 = vpack.c.bf16 %v643, %v643
    %645 = vmatprep.subr.bf16.mxu0 %v499
    %646 = vmatpush1.bf16.msra.mxu0 %v498
    %647 = vmatprep.subr.bf16.mxu0 %v495
    %648 = vmatpush1.bf16.msra.mxu0 %v494
    %649 = vmatprep.subr.bf16.mxu0 %v491
    %650 = vmatpush1.bf16.msra.mxu0 %v490
    %651 = vmatprep.subr.bf16.mxu0 %v487
    %652 = vmatpush1.bf16.msra.mxu0 %v486
    %653 = vmatprep.subr.bf16.mxu0 %v483
    %654 = vmatpush1.bf16.msra.mxu0 %v482
    %655 = vmatprep.subr.bf16.mxu0 %v479
    %656 = vmatpush1.bf16.msra.mxu0 %v478
    %657 = vmatprep.subr.bf16.mxu0 %v475
    %658 = vmatpush1.bf16.msra.mxu0 %v474
    %659 = vmatprep.subr.bf16.mxu0 %v471
    %660 = vmatpush1.bf16.msra.mxu0 %v470
    %661 = vmatprep.subr.bf16.mxu0 0
    %662 = vmatpush2.bf16.msra.mxu0 0
    %663 = vmatprep.subr.bf16.mxu0 0
    %664 = vmatpush2.bf16.msra.mxu0 0
    %665 = vmatprep.subr.bf16.mxu0 0
    %666 = vmatpush2.bf16.msra.mxu0 0
    %667 = vmatprep.subr.bf16.mxu0 0
    %668 = vmatpush2.bf16.msra.mxu0 0
    %669 = vmatprep.subr.bf16.mxu0 0
    %670 = vmatpush2.bf16.msra.mxu0 0
    %671 = vmatprep.subr.bf16.mxu0 0
    %672 = vmatpush2.bf16.msra.mxu0 0
    %673 = vmatprep.subr.bf16.mxu0 0
    %674 = vmatpush2.bf16.msra.mxu0 0
    %675 = vmatprep.subr.bf16.mxu0 0
    %676 = vmatpush2.bf16.msra.mxu0 0
    %677 = vmatprep.mubr.bf16.mxu0 0
    %678 = vmatmul.mubr.bf16.gmra.mxu0 %v644
    %v679 = vpop.f32.mrf.mxu0
    %v680 = vadd.f32 0.0, %v679
    %v681 = vpop.f32.mrf.mxu0
    %v682 = vadd.f32 0.0, %v681
    %v683 = vpop.f32.mrf.mxu0
    %v684 = vpop.f32.mrf.mxu0
    %685 = vdwg.mxu0
    %686 = vmatprep.subr.bf16.mxu0 %v501
    %687 = vmatpush1.bf16.msra.mxu0 %v500
    %688 = vmatprep.subr.bf16.mxu0 %v497
    %689 = vmatpush1.bf16.msra.mxu0 %v496
    %690 = vmatprep.subr.bf16.mxu0 %v493
    %691 = vmatpush1.bf16.msra.mxu0 %v492
    %692 = vmatprep.subr.bf16.mxu0 %v489
    %693 = vmatpush1.bf16.msra.mxu0 %v488
    %694 = vmatprep.subr.bf16.mxu0 %v485
    %695 = vmatpush1.bf16.msra.mxu0 %v484
    %696 = vmatprep.subr.bf16.mxu0 %v481
    %697 = vmatpush1.bf16.msra.mxu0 %v480
    %698 = vmatprep.subr.bf16.mxu0 %v477
    %699 = vmatpush1.bf16.msra.mxu0 %v476
    %700 = vmatprep.subr.bf16.mxu0 %v473
    %701 = vmatpush1.bf16.msra.mxu0 %v472
    %702 = vmatprep.subr.bf16.mxu0 0
    %703 = vmatpush2.bf16.msra.mxu0 0
    %704 = vmatprep.subr.bf16.mxu0 0
    %705 = vmatpush2.bf16.msra.mxu0 0
    %706 = vmatprep.subr.bf16.mxu0 0
    %707 = vmatpush2.bf16.msra.mxu0 0
    %708 = vmatprep.subr.bf16.mxu0 0
    %709 = vmatpush2.bf16.msra.mxu0 0
    %710 = vmatprep.subr.bf16.mxu0 0
    %711 = vmatpush2.bf16.msra.mxu0 0
    %712 = vmatprep.subr.bf16.mxu0 0
    %713 = vmatpush2.bf16.msra.mxu0 0
    %714 = vmatprep.subr.bf16.mxu0 0
    %715 = vmatpush2.bf16.msra.mxu0 0
    %716 = vmatprep.subr.bf16.mxu0 0
    %717 = vmatpush2.bf16.msra.mxu0 0
    %718 = vmatprep.mubr.bf16.mxu0 0
    %719 = vmatmul.mubr.bf16.gmra.mxu0 %v644
    %v720 = vpop.f32.mrf.mxu0
    %v721 = vadd.f32 0.0, %v720
    %v722 = vpop.f32.mrf.mxu0
    %v723 = vadd.f32 0.0, %v722
    %v724 = vpop.f32.mrf.mxu0
    %v725 = vpop.f32.mrf.mxu0
    %726 = vdwg.mxu0
    %v727 = vadd.f32 %v232, %v680
    %v728 = vadd.f32 %v234, %v682
    %v729 = vadd.f32 %v305, %v721
    %v730 = vadd.f32 %v307, %v723
    %v731 = vxor.u32 %v727, 2147483648
    %v732 = vxor.u32 %v728, 2147483648
    %v733 = vxor.u32 %v729, 2147483648
    %v734 = vmul.f32 %v731, 1.442695
    %v735 = vpow.pop %v734
    %v736 = vmul.f32 %v732, 1.442695
    %v737 = vpow.pop %v736
    %v738 = vmul.f32 %v733, 1.442695
    %v739 = vpow.pop %v738
    %v740 = vadd.f32 %v735, 1.0
    %v741 = vadd.f32 %v737, 1.0
    %v742 = vadd.f32 %v739, 1.0
    %v743 = vrcp.pop %v740
    %v744 = vmul.f32 1.0, %v743
    %v745 = vrcp.pop %v741
    %v746 = vmul.f32 1.0, %v745
    %v747 = vrcp.pop %v742
    %v748 = vmul.f32 1.0, %v747
    %v749 = vtanh.pop %v730
    %v750 = vmul.f32 %v746, %v641
    %v751 = vmul.f32 %v744, %v749
    %v752 = vadd.f32 %v750, %v751
    %v753 = vtanh.pop %v752
    %v754 = vmul.f32 %v748, %v753
    %v755 = vpack.c.bf16 %v754, %v754
    %756 = vmatprep.subr.bf16.mxu0 %v499
    %757 = vmatpush1.bf16.msra.mxu0 %v498
    %758 = vmatprep.subr.bf16.mxu0 %v495
    %759 = vmatpush1.bf16.msra.mxu0 %v494
    %760 = vmatprep.subr.bf16.mxu0 %v491
    %761 = vmatpush1.bf16.msra.mxu0 %v490
    %762 = vmatprep.subr.bf16.mxu0 %v487
    %763 = vmatpush1.bf16.msra.mxu0 %v486
    %764 = vmatprep.subr.bf16.mxu0 %v483
    %765 = vmatpush1.bf16.msra.mxu0 %v482
    %766 = vmatprep.subr.bf16.mxu0 %v479
    %767 = vmatpush1.bf16.msra.mxu0 %v478
    %768 = vmatprep.subr.bf16.mxu0 %v475
    %769 = vmatpush1.bf16.msra.mxu0 %v474
    %770 = vmatprep.subr.bf16.mxu0 %v471
    %771 = vmatpush1.bf16.msra.mxu0 %v470
    %772 = vmatprep.subr.bf16.mxu0 0
    %773 = vmatpush2.bf16.msra.mxu0 0
    %774 = vmatprep.subr.bf16.mxu0 0
    %775 = vmatpush2.bf16.msra.mxu0 0
    %776 = vmatprep.subr.bf16.mxu0 0
    %777 = vmatpush2.bf16.msra.mxu0 0
    %778 = vmatprep.subr.bf16.mxu0 0
    %779 = vmatpush2.bf16.msra.mxu0 0
    %780 = vmatprep.subr.bf16.mxu0 0
    %781 = vmatpush2.bf16.msra.mxu0 0
    %782 = vmatprep.subr.bf16.mxu0 0
    %783 = vmatpush2.bf16.msra.mxu0 0
    %784 = vmatprep.subr.bf16.mxu0 0
    %785 = vmatpush2.bf16.msra.mxu0 0
    %786 = vmatprep.subr.bf16.mxu0 0
    %787 = vmatpush2.bf16.msra.mxu0 0
    %788 = vmatprep.mubr.bf16.mxu0 0
    %789 = vmatmul.mubr.bf16.gmra.mxu0 %v755
    %v790 = vpop.f32.mrf.mxu0
    %v791 = vadd.f32 0.0, %v790
    %v792 = vpop.f32.mrf.mxu0
    %v793 = vadd.f32 0.0, %v792
    %v794 = vpop.f32.mrf.mxu0
    %v795 = vpop.f32.mrf.mxu0
    %796 = vdwg.mxu0
    %797 = vmatprep.subr.bf16.mxu0 %v501
    %798 = vmatpush1.bf16.msra.mxu0 %v500
    %799 = vmatprep.subr.bf16.mxu0 %v497
    %800 = vmatpush1.bf16.msra.mxu0 %v496
    %801 = vmatprep.subr.bf16.mxu0 %v493
    %802 = vmatpush1.bf16.msra.mxu0 %v492
    %803 = vmatprep.subr.bf16.mxu0 %v489
    %804 = vmatpush1.bf16.msra.mxu0 %v488
    %805 = vmatprep.subr.bf16.mxu0 %v485
    %806 = vmatpush1.bf16.msra.mxu0 %v484
    %807 = vmatprep.subr.bf16.mxu0 %v481
    %808 = vmatpush1.bf16.msra.mxu0 %v480
    %809 = vmatprep.subr.bf16.mxu0 %v477
    %810 = vmatpush1.bf16.msra.mxu0 %v476
    %811 = vmatprep.subr.bf16.mxu0 %v473
    %812 = vmatpush1.bf16.msra.mxu0 %v472
    %813 = vmatprep.subr.bf16.mxu0 0
    %814 = vmatpush2.bf16.msra.mxu0 0
    %815 = vmatprep.subr.bf16.mxu0 0
    %816 = vmatpush2.bf16.msra.mxu0 0
    %817 = vmatprep.subr.bf16.mxu0 0
    %818 = vmatpush2.bf16.msra.mxu0 0
    %819 = vmatprep.subr.bf16.mxu0 0
    %820 = vmatpush2.bf16.msra.mxu0 0
    %821 = vmatprep.subr.bf16.mxu0 0
    %822 = vmatpush2.bf16.msra.mxu0 0
    %823 = vmatprep.subr.bf16.mxu0 0
    %824 = vmatpush2.bf16.msra.mxu0 0
    %825 = vmatprep.subr.bf16.mxu0 0
    %826 = vmatpush2.bf16.msra.mxu0 0
    %827 = vmatprep.subr.bf16.mxu0 0
    %828 = vmatpush2.bf16.msra.mxu0 0
    %829 = vmatprep.mubr.bf16.mxu0 0
    %830 = vmatmul.mubr.bf16.gmra.mxu0 %v755
    %v831 = vpop.f32.mrf.mxu0
    %v832 = vadd.f32 0.0, %v831
    %v833 = vpop.f32.mrf.mxu0
    %v834 = vadd.f32 0.0, %v833
    %v835 = vpop.f32.mrf.mxu0
    %v836 = vpop.f32.mrf.mxu0
    %837 = vdwg.mxu0
    %v838 = vadd.f32 %v238, %v791
    %v839 = vadd.f32 %v240, %v793
    %v840 = vadd.f32 %v311, %v832
    %v841 = vadd.f32 %v313, %v834
    %v842 = vxor.u32 %v838, 2147483648
    %v843 = vxor.u32 %v839, 2147483648
    %v844 = vxor.u32 %v840, 2147483648
    %v845 = vmul.f32 %v842, 1.442695
    %v846 = vpow.pop %v845
    %v847 = vmul.f32 %v843, 1.442695
    %v848 = vpow.pop %v847
    %v849 = vmul.f32 %v844, 1.442695
    %v850 = vpow.pop %v849
    %v851 = vadd.f32 %v846, 1.0
    %v852 = vadd.f32 %v848, 1.0
    %v853 = vadd.f32 %v850, 1.0
    %v854 = vrcp.pop %v851
    %v855 = vmul.f32 1.0, %v854
    %v856 = vrcp.pop %v852
    %v857 = vmul.f32 1.0, %v856
    %v858 = vrcp.pop %v853
    %v859 = vmul.f32 1.0, %v858
    %v860 = vtanh.pop %v841
    %v861 = vmul.f32 %v857, %v752
    %v862 = vmul.f32 %v855, %v860
    %v863 = vadd.f32 %v861, %v862
    %v864 = vtanh.pop %v863
    %v865 = vmul.f32 %v859, %v864
    %v866 = vpack.c.bf16 %v865, %v865
    %867 = vmatprep.subr.bf16.mxu0 %v499
    %868 = vmatpush1.bf16.msra.mxu0 %v498
    %869 = vmatprep.subr.bf16.mxu0 %v495
    %870 = vmatpush1.bf16.msra.mxu0 %v494
    %871 = vmatprep.subr.bf16.mxu0 %v491
    %872 = vmatpush1.bf16.msra.mxu0 %v490
    %873 = vmatprep.subr.bf16.mxu0 %v487
    %874 = vmatpush1.bf16.msra.mxu0 %v486
    %875 = vmatprep.subr.bf16.mxu0 %v483
    %876 = vmatpush1.bf16.msra.mxu0 %v482
    %877 = vmatprep.subr.bf16.mxu0 %v479
    %878 = vmatpush1.bf16.msra.mxu0 %v478
    %879 = vmatprep.subr.bf16.mxu0 %v475
    %880 = vmatpush1.bf16.msra.mxu0 %v474
    %881 = vmatprep.subr.bf16.mxu0 %v471
    %882 = vmatpush1.bf16.msra.mxu0 %v470
    %883 = vmatprep.subr.bf16.mxu0 0
    %884 = vmatpush2.bf16.msra.mxu0 0
    %885 = vmatprep.subr.bf16.mxu0 0
    %886 = vmatpush2.bf16.msra.mxu0 0
    %887 = vmatprep.subr.bf16.mxu0 0
    %888 = vmatpush2.bf16.msra.mxu0 0
    %889 = vmatprep.subr.bf16.mxu0 0
    %890 = vmatpush2.bf16.msra.mxu0 0
    %891 = vmatprep.subr.bf16.mxu0 0
    %892 = vmatpush2.bf16.msra.mxu0 0
    %893 = vmatprep.subr.bf16.mxu0 0
    %894 = vmatpush2.bf16.msra.mxu0 0
    %895 = vmatprep.subr.bf16.mxu0 0
    %896 = vmatpush2.bf16.msra.mxu0 0
    %897 = vmatprep.subr.bf16.mxu0 0
    %898 = vmatpush2.bf16.msra.mxu0 0
    %899 = vmatprep.mubr.bf16.mxu0 0
    %900 = vmatmul.mubr.bf16.gmra.mxu0 %v866
    %v901 = vpop.f32.mrf.mxu0
    %v902 = vadd.f32 0.0, %v901
    %v903 = vpop.f32.mrf.mxu0
    %v904 = vadd.f32 0.0, %v903
    %v905 = vpop.f32.mrf.mxu0
    %v906 = vpop.f32.mrf.mxu0
    %907 = vdwg.mxu0
    %908 = vmatprep.subr.bf16.mxu0 %v501
    %909 = vmatpush1.bf16.msra.mxu0 %v500
    %910 = vmatprep.subr.bf16.mxu0 %v497
    %911 = vmatpush1.bf16.msra.mxu0 %v496
    %912 = vmatprep.subr.bf16.mxu0 %v493
    %913 = vmatpush1.bf16.msra.mxu0 %v492
    %914 = vmatprep.subr.bf16.mxu0 %v489
    %915 = vmatpush1.bf16.msra.mxu0 %v488
    %916 = vmatprep.subr.bf16.mxu0 %v485
    %917 = vmatpush1.bf16.msra.mxu0 %v484
    %918 = vmatprep.subr.bf16.mxu0 %v481
    %919 = vmatpush1.bf16.msra.mxu0 %v480
    %920 = vmatprep.subr.bf16.mxu0 %v477
    %921 = vmatpush1.bf16.msra.mxu0 %v476
    %922 = vmatprep.subr.bf16.mxu0 %v473
    %923 = vmatpush1.bf16.msra.mxu0 %v472
    %924 = vmatprep.subr.bf16.mxu0 0
    %925 = vmatpush2.bf16.msra.mxu0 0
    %926 = vmatprep.subr.bf16.mxu0 0
    %927 = vmatpush2.bf16.msra.mxu0 0
    %928 = vmatprep.subr.bf16.mxu0 0
    %929 = vmatpush2.bf16.msra.mxu0 0
    %930 = vmatprep.subr.bf16.mxu0 0
    %931 = vmatpush2.bf16.msra.mxu0 0
    %932 = vmatprep.subr.bf16.mxu0 0
    %933 = vmatpush2.bf16.msra.mxu0 0
    %934 = vmatprep.subr.bf16.mxu0 0
    %935 = vmatpush2.bf16.msra.mxu0 0
    %936 = vmatprep.subr.bf16.mxu0 0
    %937 = vmatpush2.bf16.msra.mxu0 0
    %938 = vmatprep.subr.bf16.mxu0 0
    %939 = vmatpush2.bf16.msra.mxu0 0
    %940 = vmatprep.mubr.bf16.mxu0 0
    %941 = vmatmul.mubr.bf16.gmra.mxu0 %v866
    %v942 = vpop.f32.mrf.mxu0
    %v943 = vadd.f32 0.0, %v942
    %v944 = vpop.f32.mrf.mxu0
    %v945 = vadd.f32 0.0, %v944
    %v946 = vpop.f32.mrf.mxu0
    %v947 = vpop.f32.mrf.mxu0
    %948 = vdwg.mxu0
    %v949 = vadd.f32 %v242, %v902
    %v950 = vadd.f32 %v244, %v904
    %v951 = vadd.f32 %v315, %v943
    %v952 = vadd.f32 %v317, %v945
    %v953 = vxor.u32 %v949, 2147483648
    %v954 = vxor.u32 %v950, 2147483648
    %v955 = vxor.u32 %v951, 2147483648
    %v956 = vmul.f32 %v953, 1.442695
    %v957 = vpow.pop %v956
    %v958 = vmul.f32 %v954, 1.442695
    %v959 = vpow.pop %v958
    %v960 = vmul.f32 %v955, 1.442695
    %v961 = vpow.pop %v960
    %v962 = vadd.f32 %v957, 1.0
    %v963 = vadd.f32 %v959, 1.0
    %v964 = vadd.f32 %v961, 1.0
    %v965 = vrcp.pop %v962
    %v966 = vmul.f32 1.0, %v965
    %v967 = vrcp.pop %v963
    %v968 = vmul.f32 1.0, %v967
    %v969 = vrcp.pop %v964
    %v970 = vmul.f32 1.0, %v969
    %v971 = vtanh.pop %v952
    %v972 = vmul.f32 %v968, %v863
    %v973 = vmul.f32 %v966, %v971
    %v974 = vadd.f32 %v972, %v973
    %v975 = vtanh.pop %v974
    %v976 = vmul.f32 %v970, %v975
    %v977 = vpack.c.bf16 %v976, %v976
    %978 = vmatprep.subr.bf16.mxu0 %v499
    %979 = vmatpush1.bf16.msra.mxu0 %v498
    %980 = vmatprep.subr.bf16.mxu0 %v495
    %981 = vmatpush1.bf16.msra.mxu0 %v494
    %982 = vmatprep.subr.bf16.mxu0 %v491
    %983 = vmatpush1.bf16.msra.mxu0 %v490
    %984 = vmatprep.subr.bf16.mxu0 %v487
    %985 = vmatpush1.bf16.msra.mxu0 %v486
    %986 = vmatprep.subr.bf16.mxu0 %v483
    %987 = vmatpush1.bf16.msra.mxu0 %v482
    %988 = vmatprep.subr.bf16.mxu0 %v479
    %989 = vmatpush1.bf16.msra.mxu0 %v478
    %990 = vmatprep.subr.bf16.mxu0 %v475
    %991 = vmatpush1.bf16.msra.mxu0 %v474
    %992 = vmatprep.subr.bf16.mxu0 %v471
    %993 = vmatpush1.bf16.msra.mxu0 %v470
    %994 = vmatprep.subr.bf16.mxu0 0
    %995 = vmatpush2.bf16.msra.mxu0 0
    %996 = vmatprep.subr.bf16.mxu0 0
    %997 = vmatpush2.bf16.msra.mxu0 0
    %998 = vmatprep.subr.bf16.mxu0 0
    %999 = vmatpush2.bf16.msra.mxu0 0
    %1000 = vmatprep.subr.bf16.mxu0 0
    %1001 = vmatpush2.bf16.msra.mxu0 0
    %1002 = vmatprep.subr.bf16.mxu0 0
    %1003 = vmatpush2.bf16.msra.mxu0 0
    %1004 = vmatprep.subr.bf16.mxu0 0
    %1005 = vmatpush2.bf16.msra.mxu0 0
    %1006 = vmatprep.subr.bf16.mxu0 0
    %1007 = vmatpush2.bf16.msra.mxu0 0
    %1008 = vmatprep.subr.bf16.mxu0 0
    %1009 = vmatpush2.bf16.msra.mxu0 0
    %1010 = vmatprep.mubr.bf16.mxu0 0
    %1011 = vmatmul.mubr.bf16.gmra.mxu0 %v977
    %v1012 = vpop.f32.mrf.mxu0
    %v1013 = vadd.f32 0.0, %v1012
    %v1014 = vpop.f32.mrf.mxu0
    %v1015 = vadd.f32 0.0, %v1014
    %v1016 = vpop.f32.mrf.mxu0
    %v1017 = vpop.f32.mrf.mxu0
    %1018 = vdwg.mxu0
    %1019 = vmatprep.subr.bf16.mxu0 %v501
    %1020 = vmatpush1.bf16.msra.mxu0 %v500
    %1021 = vmatprep.subr.bf16.mxu0 %v497
    %1022 = vmatpush1.bf16.msra.mxu0 %v496
    %1023 = vmatprep.subr.bf16.mxu0 %v493
    %1024 = vmatpush1.bf16.msra.mxu0 %v492
    %1025 = vmatprep.subr.bf16.mxu0 %v489
    %1026 = vmatpush1.bf16.msra.mxu0 %v488
    %1027 = vmatprep.subr.bf16.mxu0 %v485
    %1028 = vmatpush1.bf16.msra.mxu0 %v484
    %1029 = vmatprep.subr.bf16.mxu0 %v481
    %1030 = vmatpush1.bf16.msra.mxu0 %v480
    %1031 = vmatprep.subr.bf16.mxu0 %v477
    %1032 = vmatpush1.bf16.msra.mxu0 %v476
    %1033 = vmatprep.subr.bf16.mxu0 %v473
    %1034 = vmatpush1.bf16.msra.mxu0 %v472
    %1035 = vmatprep.subr.bf16.mxu0 0
    %1036 = vmatpush2.bf16.msra.mxu0 0
    %1037 = vmatprep.subr.bf16.mxu0 0
    %1038 = vmatpush2.bf16.msra.mxu0 0
    %1039 = vmatprep.subr.bf16.mxu0 0
    %1040 = vmatpush2.bf16.msra.mxu0 0
    %1041 = vmatprep.subr.bf16.mxu0 0
    %1042 = vmatpush2.bf16.msra.mxu0 0
    %1043 = vmatprep.subr.bf16.mxu0 0
    %1044 = vmatpush2.bf16.msra.mxu0 0
    %1045 = vmatprep.subr.bf16.mxu0 0
    %1046 = vmatpush2.bf16.msra.mxu0 0
    %1047 = vmatprep.subr.bf16.mxu0 0
    %1048 = vmatpush2.bf16.msra.mxu0 0
    %1049 = vmatprep.subr.bf16.mxu0 0
    %1050 = vmatpush2.bf16.msra.mxu0 0
    %1051 = vmatprep.mubr.bf16.mxu0 0
    %1052 = vmatmul.mubr.bf16.gmra.mxu0 %v977
    %v1053 = vpop.f32.mrf.mxu0
    %v1054 = vadd.f32 0.0, %v1053
    %v1055 = vpop.f32.mrf.mxu0
    %v1056 = vadd.f32 0.0, %v1055
    %v1057 = vpop.f32.mrf.mxu0
    %v1058 = vpop.f32.mrf.mxu0
    %1059 = vdwg.mxu0
    %v1060 = vadd.f32 %v248, %v1013
    %v1061 = vadd.f32 %v250, %v1015
    %v1062 = vadd.f32 %v321, %v1054
    %v1063 = vadd.f32 %v323, %v1056
    %v1064 = vxor.u32 %v1060, 2147483648
    %v1065 = vxor.u32 %v1061, 2147483648
    %v1066 = vxor.u32 %v1062, 2147483648
    %v1067 = vmul.f32 %v1064, 1.442695
    %v1068 = vpow.pop %v1067
    %v1069 = vmul.f32 %v1065, 1.442695
    %v1070 = vpow.pop %v1069
    %v1071 = vmul.f32 %v1066, 1.442695
    %v1072 = vpow.pop %v1071
    %v1073 = vadd.f32 %v1068, 1.0
    %v1074 = vadd.f32 %v1070, 1.0
    %v1075 = vadd.f32 %v1072, 1.0
    %v1076 = vrcp.pop %v1073
    %v1077 = vmul.f32 1.0, %v1076
    %v1078 = vrcp.pop %v1074
    %v1079 = vmul.f32 1.0, %v1078
    %v1080 = vrcp.pop %v1075
    %v1081 = vmul.f32 1.0, %v1080
    %v1082 = vtanh.pop %v1063
    %v1083 = vmul.f32 %v1079, %v974
    %v1084 = vmul.f32 %v1077, %v1082
    %v1085 = vadd.f32 %v1083, %v1084
    %v1086 = vtanh.pop %v1085
    %v1087 = vmul.f32 %v1081, %v1086
    %v1088 = vpack.c.bf16 %v1087, %v1087
    %1089 = vmatprep.subr.bf16.mxu0 %v499
    %1090 = vmatpush1.bf16.msra.mxu0 %v498
    %1091 = vmatprep.subr.bf16.mxu0 %v495
    %1092 = vmatpush1.bf16.msra.mxu0 %v494
    %1093 = vmatprep.subr.bf16.mxu0 %v491
    %1094 = vmatpush1.bf16.msra.mxu0 %v490
    %1095 = vmatprep.subr.bf16.mxu0 %v487
    %1096 = vmatpush1.bf16.msra.mxu0 %v486
    %1097 = vmatprep.subr.bf16.mxu0 %v483
    %1098 = vmatpush1.bf16.msra.mxu0 %v482
    %1099 = vmatprep.subr.bf16.mxu0 %v479
    %1100 = vmatpush1.bf16.msra.mxu0 %v478
    %1101 = vmatprep.subr.bf16.mxu0 %v475
    %1102 = vmatpush1.bf16.msra.mxu0 %v474
    %1103 = vmatprep.subr.bf16.mxu0 %v471
    %1104 = vmatpush1.bf16.msra.mxu0 %v470
    %1105 = vmatprep.subr.bf16.mxu0 0
    %1106 = vmatpush2.bf16.msra.mxu0 0
    %1107 = vmatprep.subr.bf16.mxu0 0
    %1108 = vmatpush2.bf16.msra.mxu0 0
    %1109 = vmatprep.subr.bf16.mxu0 0
    %1110 = vmatpush2.bf16.msra.mxu0 0
    %1111 = vmatprep.subr.bf16.mxu0 0
    %1112 = vmatpush2.bf16.msra.mxu0 0
    %1113 = vmatprep.subr.bf16.mxu0 0
    %1114 = vmatpush2.bf16.msra.mxu0 0
    %1115 = vmatprep.subr.bf16.mxu0 0
    %1116 = vmatpush2.bf16.msra.mxu0 0
    %1117 = vmatprep.subr.bf16.mxu0 0
    %1118 = vmatpush2.bf16.msra.mxu0 0
    %1119 = vmatprep.subr.bf16.mxu0 0
    %1120 = vmatpush2.bf16.msra.mxu0 0
    %1121 = vmatprep.mubr.bf16.mxu0 0
    %1122 = vmatmul.mubr.bf16.gmra.mxu0 %v1088
    %v1123 = vpop.f32.mrf.mxu0
    %v1124 = vadd.f32 0.0, %v1123
    %v1125 = vpop.f32.mrf.mxu0
    %v1126 = vadd.f32 0.0, %v1125
    %v1127 = vpop.f32.mrf.mxu0
    %v1128 = vpop.f32.mrf.mxu0
    %1129 = vdwg.mxu0
    %1130 = vmatprep.subr.bf16.mxu0 %v501
    %1131 = vmatpush1.bf16.msra.mxu0 %v500
    %1132 = vmatprep.subr.bf16.mxu0 %v497
    %1133 = vmatpush1.bf16.msra.mxu0 %v496
    %1134 = vmatprep.subr.bf16.mxu0 %v493
    %1135 = vmatpush1.bf16.msra.mxu0 %v492
    %1136 = vmatprep.subr.bf16.mxu0 %v489
    %1137 = vmatpush1.bf16.msra.mxu0 %v488
    %1138 = vmatprep.subr.bf16.mxu0 %v485
    %1139 = vmatpush1.bf16.msra.mxu0 %v484
    %1140 = vmatprep.subr.bf16.mxu0 %v481
    %1141 = vmatpush1.bf16.msra.mxu0 %v480
    %1142 = vmatprep.subr.bf16.mxu0 %v477
    %1143 = vmatpush1.bf16.msra.mxu0 %v476
    %1144 = vmatprep.subr.bf16.mxu0 %v473
    %1145 = vmatpush1.bf16.msra.mxu0 %v472
    %1146 = vmatprep.subr.bf16.mxu0 0
    %1147 = vmatpush2.bf16.msra.mxu0 0
    %1148 = vmatprep.subr.bf16.mxu0 0
    %1149 = vmatpush2.bf16.msra.mxu0 0
    %1150 = vmatprep.subr.bf16.mxu0 0
    %1151 = vmatpush2.bf16.msra.mxu0 0
    %1152 = vmatprep.subr.bf16.mxu0 0
    %1153 = vmatpush2.bf16.msra.mxu0 0
    %1154 = vmatprep.subr.bf16.mxu0 0
    %1155 = vmatpush2.bf16.msra.mxu0 0
    %1156 = vmatprep.subr.bf16.mxu0 0
    %1157 = vmatpush2.bf16.msra.mxu0 0
    %1158 = vmatprep.subr.bf16.mxu0 0
    %1159 = vmatpush2.bf16.msra.mxu0 0
    %1160 = vmatprep.subr.bf16.mxu0 0
    %1161 = vmatpush2.bf16.msra.mxu0 0
    %1162 = vmatprep.mubr.bf16.mxu0 0
    %1163 = vmatmul.mubr.bf16.gmra.mxu0 %v1088
    %v1164 = vpop.f32.mrf.mxu0
    %v1165 = vadd.f32 0.0, %v1164
    %v1166 = vpop.f32.mrf.mxu0
    %v1167 = vadd.f32 0.0, %v1166
    %v1168 = vpop.f32.mrf.mxu0
    %v1169 = vpop.f32.mrf.mxu0
    %1170 = vdwg.mxu0
    %v1171 = vadd.f32 %v252, %v1124
    %v1172 = vadd.f32 %v254, %v1126
    %v1173 = vadd.f32 %v325, %v1165
    %v1174 = vadd.f32 %v327, %v1167
    %v1175 = vxor.u32 %v1171, 2147483648
    %v1176 = vxor.u32 %v1172, 2147483648
    %v1177 = vxor.u32 %v1173, 2147483648
    %v1178 = vmul.f32 %v1175, 1.442695
    %v1179 = vpow.pop %v1178
    %v1180 = vmul.f32 %v1176, 1.442695
    %v1181 = vpow.pop %v1180
    %v1182 = vmul.f32 %v1177, 1.442695
    %v1183 = vpow.pop %v1182
    %v1184 = vadd.f32 %v1179, 1.0
    %v1185 = vadd.f32 %v1181, 1.0
    %v1186 = vadd.f32 %v1183, 1.0
    %v1187 = vrcp.pop %v1184
    %v1188 = vmul.f32 1.0, %v1187
    %v1189 = vrcp.pop %v1185
    %v1190 = vmul.f32 1.0, %v1189
    %v1191 = vrcp.pop %v1186
    %v1192 = vmul.f32 1.0, %v1191
    %v1193 = vtanh.pop %v1174
    %v1194 = vmul.f32 %v1190, %v1085
    %v1195 = vmul.f32 %v1188, %v1193
    %v1196 = vadd.f32 %v1194, %v1195
    %v1197 = vtanh.pop %v1196
    %v1198 = vmul.f32 %v1192, %v1197
    %v1199 = vpack.c.bf16 %v1198, %v1198
    %1200 = vmatprep.subr.bf16.mxu0 %v499
    %1201 = vmatpush1.bf16.msra.mxu0 %v498
    %1202 = vmatprep.subr.bf16.mxu0 %v495
    %1203 = vmatpush1.bf16.msra.mxu0 %v494
    %1204 = vmatprep.subr.bf16.mxu0 %v491
    %1205 = vmatpush1.bf16.msra.mxu0 %v490
    %1206 = vmatprep.subr.bf16.mxu0 %v487
    %1207 = vmatpush1.bf16.msra.mxu0 %v486
    %1208 = vmatprep.subr.bf16.mxu0 %v483
    %1209 = vmatpush1.bf16.msra.mxu0 %v482
    %1210 = vmatprep.subr.bf16.mxu0 %v479
    %1211 = vmatpush1.bf16.msra.mxu0 %v478
    %1212 = vmatprep.subr.bf16.mxu0 %v475
    %1213 = vmatpush1.bf16.msra.mxu0 %v474
    %1214 = vmatprep.subr.bf16.mxu0 %v471
    %1215 = vmatpush1.bf16.msra.mxu0 %v470
    %1216 = vmatprep.subr.bf16.mxu0 0
    %1217 = vmatpush2.bf16.msra.mxu0 0
    %1218 = vmatprep.subr.bf16.mxu0 0
    %1219 = vmatpush2.bf16.msra.mxu0 0
    %1220 = vmatprep.subr.bf16.mxu0 0
    %1221 = vmatpush2.bf16.msra.mxu0 0
    %1222 = vmatprep.subr.bf16.mxu0 0
    %1223 = vmatpush2.bf16.msra.mxu0 0
    %1224 = vmatprep.subr.bf16.mxu0 0
    %1225 = vmatpush2.bf16.msra.mxu0 0
    %1226 = vmatprep.subr.bf16.mxu0 0
    %1227 = vmatpush2.bf16.msra.mxu0 0
    %1228 = vmatprep.subr.bf16.mxu0 0
    %1229 = vmatpush2.bf16.msra.mxu0 0
    %1230 = vmatprep.subr.bf16.mxu0 0
    %1231 = vmatpush2.bf16.msra.mxu0 0
    %1232 = vmatprep.mubr.bf16.mxu0 0
    %1233 = vmatmul.mubr.bf16.gmra.mxu0 %v1199
    %v1234 = vpop.f32.mrf.mxu0
    %v1235 = vadd.f32 0.0, %v1234
    %v1236 = vpop.f32.mrf.mxu0
    %v1237 = vadd.f32 0.0, %v1236
    %v1238 = vpop.f32.mrf.mxu0
    %v1239 = vpop.f32.mrf.mxu0
    %1240 = vdwg.mxu0
    %1241 = vmatprep.subr.bf16.mxu0 %v501
    %1242 = vmatpush1.bf16.msra.mxu0 %v500
    %1243 = vmatprep.subr.bf16.mxu0 %v497
    %1244 = vmatpush1.bf16.msra.mxu0 %v496
    %1245 = vmatprep.subr.bf16.mxu0 %v493
    %1246 = vmatpush1.bf16.msra.mxu0 %v492
    %1247 = vmatprep.subr.bf16.mxu0 %v489
    %1248 = vmatpush1.bf16.msra.mxu0 %v488
    %1249 = vmatprep.subr.bf16.mxu0 %v485
    %1250 = vmatpush1.bf16.msra.mxu0 %v484
    %1251 = vmatprep.subr.bf16.mxu0 %v481
    %1252 = vmatpush1.bf16.msra.mxu0 %v480
    %1253 = vmatprep.subr.bf16.mxu0 %v477
    %1254 = vmatpush1.bf16.msra.mxu0 %v476
    %1255 = vmatprep.subr.bf16.mxu0 %v473
    %1256 = vmatpush1.bf16.msra.mxu0 %v472
    %1257 = vmatprep.subr.bf16.mxu0 0
    %1258 = vmatpush2.bf16.msra.mxu0 0
    %1259 = vmatprep.subr.bf16.mxu0 0
    %1260 = vmatpush2.bf16.msra.mxu0 0
    %1261 = vmatprep.subr.bf16.mxu0 0
    %1262 = vmatpush2.bf16.msra.mxu0 0
    %1263 = vmatprep.subr.bf16.mxu0 0
    %1264 = vmatpush2.bf16.msra.mxu0 0
    %1265 = vmatprep.subr.bf16.mxu0 0
    %1266 = vmatpush2.bf16.msra.mxu0 0
    %1267 = vmatprep.subr.bf16.mxu0 0
    %1268 = vmatpush2.bf16.msra.mxu0 0
    %1269 = vmatprep.subr.bf16.mxu0 0
    %1270 = vmatpush2.bf16.msra.mxu0 0
    %1271 = vmatprep.subr.bf16.mxu0 0
    %1272 = vmatpush2.bf16.msra.mxu0 0
    %1273 = vmatprep.mubr.bf16.mxu0 0
    %1274 = vmatmul.mubr.bf16.gmra.mxu0 %v1199
    %v1275 = vpop.f32.mrf.mxu0
    %v1276 = vadd.f32 0.0, %v1275
    %v1277 = vpop.f32.mrf.mxu0
    %v1278 = vadd.f32 0.0, %v1277
    %v1279 = vpop.f32.mrf.mxu0
    %v1280 = vpop.f32.mrf.mxu0
    %1281 = vdwg.mxu0
    %v1282 = vadd.f32 %v258, %v1235
    %v1283 = vadd.f32 %v260, %v1237
    %v1284 = vadd.f32 %v331, %v1276
    %v1285 = vadd.f32 %v333, %v1278
    %v1286 = vxor.u32 %v1282, 2147483648
    %v1287 = vxor.u32 %v1283, 2147483648
    %v1288 = vxor.u32 %v1284, 2147483648
    %v1289 = vmul.f32 %v1286, 1.442695
    %v1290 = vpow.pop %v1289
    %v1291 = vmul.f32 %v1287, 1.442695
    %v1292 = vpow.pop %v1291
    %v1293 = vmul.f32 %v1288, 1.442695
    %v1294 = vpow.pop %v1293
    %v1295 = vadd.f32 %v1290, 1.0
    %v1296 = vadd.f32 %v1292, 1.0
    %v1297 = vadd.f32 %v1294, 1.0
    %v1298 = vrcp.pop %v1295
    %v1299 = vmul.f32 1.0, %v1298
    %v1300 = vrcp.pop %v1296
    %v1301 = vmul.f32 1.0, %v1300
    %v1302 = vrcp.pop %v1297
    %v1303 = vmul.f32 1.0, %v1302
    %v1304 = vtanh.pop %v1285
    %v1305 = vmul.f32 %v1301, %v1196
    %v1306 = vmul.f32 %v1299, %v1304
    %v1307 = vadd.f32 %v1305, %v1306
    %v1308 = vtanh.pop %v1307
    %v1309 = vmul.f32 %v1303, %v1308
    %v1310 = vpack.c.bf16 %v1309, %v1309
    %1311 = vmatprep.subr.bf16.mxu0 %v499
    %1312 = vmatpush1.bf16.msra.mxu0 %v498
    %1313 = vmatprep.subr.bf16.mxu0 %v495
    %1314 = vmatpush1.bf16.msra.mxu0 %v494
    %1315 = vmatprep.subr.bf16.mxu0 %v491
    %1316 = vmatpush1.bf16.msra.mxu0 %v490
    %1317 = vmatprep.subr.bf16.mxu0 %v487
    %1318 = vmatpush1.bf16.msra.mxu0 %v486
    %1319 = vmatprep.subr.bf16.mxu0 %v483
    %1320 = vmatpush1.bf16.msra.mxu0 %v482
    %1321 = vmatprep.subr.bf16.mxu0 %v479
    %1322 = vmatpush1.bf16.msra.mxu0 %v478
    %1323 = vmatprep.subr.bf16.mxu0 %v475
    %1324 = vmatpush1.bf16.msra.mxu0 %v474
    %1325 = vmatprep.subr.bf16.mxu0 %v471
    %1326 = vmatpush1.bf16.msra.mxu0 %v470
    %1327 = vmatprep.subr.bf16.mxu0 0
    %1328 = vmatpush2.bf16.msra.mxu0 0
    %1329 = vmatprep.subr.bf16.mxu0 0
    %1330 = vmatpush2.bf16.msra.mxu0 0
    %1331 = vmatprep.subr.bf16.mxu0 0
    %1332 = vmatpush2.bf16.msra.mxu0 0
    %1333 = vmatprep.subr.bf16.mxu0 0
    %1334 = vmatpush2.bf16.msra.mxu0 0
    %1335 = vmatprep.subr.bf16.mxu0 0
    %1336 = vmatpush2.bf16.msra.mxu0 0
    %1337 = vmatprep.subr.bf16.mxu0 0
    %1338 = vmatpush2.bf16.msra.mxu0 0
    %1339 = vmatprep.subr.bf16.mxu0 0
    %1340 = vmatpush2.bf16.msra.mxu0 0
    %1341 = vmatprep.subr.bf16.mxu0 0
    %1342 = vmatpush2.bf16.msra.mxu0 0
    %1343 = vmatprep.mubr.bf16.mxu0 0
    %1344 = vmatmul.mubr.bf16.gmra.mxu0 %v1310
    %v1345 = vpop.f32.mrf.mxu0
    %v1346 = vadd.f32 0.0, %v1345
    %v1347 = vpop.f32.mrf.mxu0
    %v1348 = vadd.f32 0.0, %v1347
    %v1349 = vpop.f32.mrf.mxu0
    %v1350 = vpop.f32.mrf.mxu0
    %1351 = vdwg.mxu0
    %1352 = vmatprep.subr.bf16.mxu0 %v501
    %1353 = vmatpush1.bf16.msra.mxu0 %v500
    %1354 = vmatprep.subr.bf16.mxu0 %v497
    %1355 = vmatpush1.bf16.msra.mxu0 %v496
    %1356 = vmatprep.subr.bf16.mxu0 %v493
    %1357 = vmatpush1.bf16.msra.mxu0 %v492
    %1358 = vmatprep.subr.bf16.mxu0 %v489
    %1359 = vmatpush1.bf16.msra.mxu0 %v488
    %1360 = vmatprep.subr.bf16.mxu0 %v485
    %1361 = vmatpush1.bf16.msra.mxu0 %v484
    %1362 = vmatprep.subr.bf16.mxu0 %v481
    %1363 = vmatpush1.bf16.msra.mxu0 %v480
    %1364 = vmatprep.subr.bf16.mxu0 %v477
    %1365 = vmatpush1.bf16.msra.mxu0 %v476
    %1366 = vmatprep.subr.bf16.mxu0 %v473
    %1367 = vmatpush1.bf16.msra.mxu0 %v472
    %1368 = vmatprep.subr.bf16.mxu0 0
    %1369 = vmatpush2.bf16.msra.mxu0 0
    %1370 = vmatprep.subr.bf16.mxu0 0
    %1371 = vmatpush2.bf16.msra.mxu0 0
    %1372 = vmatprep.subr.bf16.mxu0 0
    %1373 = vmatpush2.bf16.msra.mxu0 0
    %1374 = vmatprep.subr.bf16.mxu0 0
    %1375 = vmatpush2.bf16.msra.mxu0 0
    %1376 = vmatprep.subr.bf16.mxu0 0
    %1377 = vmatpush2.bf16.msra.mxu0 0
    %1378 = vmatprep.subr.bf16.mxu0 0
    %1379 = vmatpush2.bf16.msra.mxu0 0
    %1380 = vmatprep.subr.bf16.mxu0 0
    %1381 = vmatpush2.bf16.msra.mxu0 0
    %1382 = vmatprep.subr.bf16.mxu0 0
    %1383 = vmatpush2.bf16.msra.mxu0 0
    %1384 = vmatprep.mubr.bf16.mxu0 0
    %1385 = vmatmul.mubr.bf16.gmra.mxu0 %v1310
    %v1386 = vpop.f32.mrf.mxu0
    %v1387 = vadd.f32 0.0, %v1386
    %v1388 = vpop.f32.mrf.mxu0
    %v1389 = vadd.f32 0.0, %v1388
    %v1390 = vpop.f32.mrf.mxu0
    %v1391 = vpop.f32.mrf.mxu0
    %1392 = vdwg.mxu0
    %v1393 = vadd.f32 %v262, %v1346
    %v1394 = vadd.f32 %v264, %v1348
    %v1395 = vadd.f32 %v335, %v1387
    %v1396 = vadd.f32 %v337, %v1389
    %v1397 = vxor.u32 %v1393, 2147483648
    %v1398 = vxor.u32 %v1394, 2147483648
    %v1399 = vxor.u32 %v1395, 2147483648
    %v1400 = vmul.f32 %v1397, 1.442695
    %v1401 = vpow.pop %v1400
    %v1402 = vmul.f32 %v1398, 1.442695
    %v1403 = vpow.pop %v1402
    %v1404 = vmul.f32 %v1399, 1.442695
    %v1405 = vpow.pop %v1404
    %v1406 = vadd.f32 %v1401, 1.0
    %v1407 = vadd.f32 %v1403, 1.0
    %v1408 = vadd.f32 %v1405, 1.0
    %v1409 = vrcp.pop %v1406
    %v1410 = vmul.f32 1.0, %v1409
    %v1411 = vrcp.pop %v1407
    %v1412 = vmul.f32 1.0, %v1411
    %v1413 = vrcp.pop %v1408
    %v1414 = vmul.f32 1.0, %v1413
    %v1415 = vtanh.pop %v1396
    %v1416 = vmul.f32 %v1412, %v1307
    %v1417 = vmul.f32 %v1410, %v1415
    %v1418 = vadd.f32 %v1416, %v1417
    %v1419 = vtanh.pop %v1418
    %v1420 = vmul.f32 %v1414, %v1419
    %v1421 = vmax.f32 %v1420, 0.0
    %v1422 = vpack.c.bf16 %v1421, %v1421
    %v1423 = vld [vmem:[%s6] sm:$0xf]
    %v1424 = vld [vmem:[%s6 + $0x4] sm:$0xf]
    %v1425 = vld [vmem:[%s6 + $0x8] sm:$0xf]
    %v1426 = vld [vmem:[%s6 + $0xc] sm:$0xf]
    %v1427 = vld [vmem:[%s6 + $0x10] sm:$0xf]
    %v1428 = vld [vmem:[%s6 + $0x14] sm:$0xf]
    %v1429 = vld [vmem:[%s6 + $0x18] sm:$0xf]
    %v1430 = vld [vmem:[%s6 + $0x1c] sm:$0xf]
    %v1431 = vld [vmem:[%s6 + $0x20] sm:$0xf]
    %v1432 = vld [vmem:[%s6 + $0x24] sm:$0xf]
    %v1433 = vld [vmem:[%s6 + $0x28] sm:$0xf]
    %v1434 = vld [vmem:[%s6 + $0x2c] sm:$0xf]
    %v1435 = vld [vmem:[%s6 + $0x30] sm:$0xf]
    %v1436 = vld [vmem:[%s6 + $0x34] sm:$0xf]
    %v1437 = vld [vmem:[%s6 + $0x38] sm:$0xf]
    %v1438 = vld [vmem:[%s6 + $0x3c] sm:$0xf]
    %v1439 = vld [vmem:[%s7] sm:$0x1]
    %v1441 = vlaneseq
    %v1442 = vshrl.u32 %v1441, 7
    %v1443 = vsub.s32 0, %v1442
    %v1444 = vrot.slane %v1439, %v1443
    %v1462 = vunpack.c.l.b16 %v1423
    %v1463 = vunpack.c.l.b16 %v1424
    %v1464 = vunpack.c.l.b16 %v1425
    %v1465 = vunpack.c.l.b16 %v1426
    %v1466 = vunpack.c.l.b16 %v1427
    %v1467 = vunpack.c.l.b16 %v1428
    %v1468 = vunpack.c.l.b16 %v1429
    %v1469 = vunpack.c.l.b16 %v1430
    %v1470 = vunpack.c.l.b16 %v1431
    %v1471 = vunpack.c.l.b16 %v1432
    %v1472 = vunpack.c.l.b16 %v1433
    %v1473 = vunpack.c.l.b16 %v1434
    %v1474 = vunpack.c.l.b16 %v1435
    %v1475 = vunpack.c.l.b16 %v1436
    %v1476 = vunpack.c.l.b16 %v1437
    %v1477 = vunpack.c.l.b16 %v1438
    %v1478 = vpack.c.b16 %v1463, %v1462
    %v1479 = vpack.c.b16 %v1465, %v1464
    %v1480 = vpack.c.b16 %v1467, %v1466
    %v1481 = vpack.c.b16 %v1469, %v1468
    %v1482 = vpack.c.b16 %v1471, %v1470
    %v1483 = vpack.c.b16 %v1473, %v1472
    %v1484 = vpack.c.b16 %v1475, %v1474
    %v1485 = vpack.c.b16 %v1477, %v1476
    %1494 = vmatprep.subr.bf16.mxu0 0
    %1495 = vmatpush1.bf16.msra.mxu0 %v1485
    %1496 = vmatprep.subr.bf16.mxu0 0
    %1497 = vmatpush1.bf16.msra.mxu0 %v1484
    %1498 = vmatprep.subr.bf16.mxu0 0
    %1499 = vmatpush1.bf16.msra.mxu0 %v1483
    %1500 = vmatprep.subr.bf16.mxu0 0
    %1501 = vmatpush1.bf16.msra.mxu0 %v1482
    %1502 = vmatprep.subr.bf16.mxu0 0
    %1503 = vmatpush1.bf16.msra.mxu0 %v1481
    %1504 = vmatprep.subr.bf16.mxu0 0
    %1505 = vmatpush1.bf16.msra.mxu0 %v1480
    %1506 = vmatprep.subr.bf16.mxu0 0
    %1507 = vmatpush1.bf16.msra.mxu0 %v1479
    %1508 = vmatprep.subr.bf16.mxu0 0
    %1509 = vmatpush1.bf16.msra.mxu0 %v1478
    %1510 = vmatprep.subr.bf16.mxu0 0
    %1511 = vmatpush2.bf16.msra.mxu0 0
    %1512 = vmatprep.subr.bf16.mxu0 0
    %1513 = vmatpush2.bf16.msra.mxu0 0
    %1514 = vmatprep.subr.bf16.mxu0 0
    %1515 = vmatpush2.bf16.msra.mxu0 0
    %1516 = vmatprep.subr.bf16.mxu0 0
    %1517 = vmatpush2.bf16.msra.mxu0 0
    %1518 = vmatprep.subr.bf16.mxu0 0
    %1519 = vmatpush2.bf16.msra.mxu0 0
    %1520 = vmatprep.subr.bf16.mxu0 0
    %1521 = vmatpush2.bf16.msra.mxu0 0
    %1522 = vmatprep.subr.bf16.mxu0 0
    %1523 = vmatpush2.bf16.msra.mxu0 0
    %1524 = vmatprep.subr.bf16.mxu0 0
    %1525 = vmatpush2.bf16.msra.mxu0 0
    %1526 = vmatprep.mubr.bf16.mxu0 0
    %1527 = vmatmul.mubr.bf16.gmra.mxu0 %v1422
    %v1528 = vpop.f32.mrf.mxu0
    %v1529 = vadd.f32 %v1444, %v1528
    %v1530 = vpop.f32.mrf.mxu0
    %v1531 = vpop.f32.mrf.mxu0
    %v1532 = vpop.f32.mrf.mxu0
    %1533 = vdwg.mxu0
    %v1534 = vmax.f32 %v1529, 0.0
    %v1535 = vpack.c.bf16 %v1534, %v1534
    %v1536 = vld [vmem:[#allocation4] sm:$0xf]
    %v1537 = vld [vmem:[#allocation4 + $0x4] sm:$0xf]
    %v1538 = vld [vmem:[#allocation4 + $0x8] sm:$0xf]
    %v1539 = vld [vmem:[#allocation4 + $0xc] sm:$0xf]
    %v1540 = vld [vmem:[#allocation4 + $0x10] sm:$0xf]
    %v1541 = vld [vmem:[#allocation4 + $0x14] sm:$0xf]
    %v1542 = vld [vmem:[#allocation4 + $0x18] sm:$0xf]
    %v1543 = vld [vmem:[#allocation4 + $0x1c] sm:$0xf]
    %v1544 = vld [vmem:[#allocation4 + $0x20] sm:$0xf]
    %v1545 = vld [vmem:[#allocation4 + $0x24] sm:$0xf]
    %v1546 = vld [vmem:[#allocation4 + $0x28] sm:$0xf]
    %v1547 = vld [vmem:[#allocation4 + $0x2c] sm:$0xf]
    %v1548 = vld [vmem:[#allocation4 + $0x30] sm:$0xf]
    %v1549 = vld [vmem:[#allocation4 + $0x34] sm:$0xf]
    %v1550 = vld [vmem:[#allocation4 + $0x38] sm:$0xf]
    %v1551 = vld [vmem:[#allocation4 + $0x3c] sm:$0xf]
    %v1552 = vld [vmem:[%s9] sm:$0x1]
    %v1554 = vlaneseq
    %v1555 = vshrl.u32 %v1554, 7
    %v1556 = vsub.s32 0, %v1555
    %v1557 = vrot.slane %v1552, %v1556
    %v1575 = vunpack.c.l.b16 %v1536
    %v1576 = vunpack.c.l.b16 %v1537
    %v1577 = vunpack.c.l.b16 %v1538
    %v1578 = vunpack.c.l.b16 %v1539
    %v1579 = vunpack.c.l.b16 %v1540
    %v1580 = vunpack.c.l.b16 %v1541
    %v1581 = vunpack.c.l.b16 %v1542
    %v1582 = vunpack.c.l.b16 %v1543
    %v1583 = vunpack.c.l.b16 %v1544
    %v1584 = vunpack.c.l.b16 %v1545
    %v1585 = vunpack.c.l.b16 %v1546
    %v1586 = vunpack.c.l.b16 %v1547
    %v1587 = vunpack.c.l.b16 %v1548
    %v1588 = vunpack.c.l.b16 %v1549
    %v1589 = vunpack.c.l.b16 %v1550
    %v1590 = vunpack.c.l.b16 %v1551
    %v1591 = vpack.c.b16 %v1576, %v1575
    %v1592 = vpack.c.b16 %v1578, %v1577
    %v1593 = vpack.c.b16 %v1580, %v1579
    %v1594 = vpack.c.b16 %v1582, %v1581
    %v1595 = vpack.c.b16 %v1584, %v1583
    %v1596 = vpack.c.b16 %v1586, %v1585
    %v1597 = vpack.c.b16 %v1588, %v1587
    %v1598 = vpack.c.b16 %v1590, %v1589
    %1607 = vmatprep.subr.bf16.mxu0 0
    %1608 = vmatpush1.bf16.msra.mxu0 %v1598
    %1609 = vmatprep.subr.bf16.mxu0 0
    %1610 = vmatpush1.bf16.msra.mxu0 %v1597
    %1611 = vmatprep.subr.bf16.mxu0 0
    %1612 = vmatpush1.bf16.msra.mxu0 %v1596
    %1613 = vmatprep.subr.bf16.mxu0 0
    %1614 = vmatpush1.bf16.msra.mxu0 %v1595
    %1615 = vmatprep.subr.bf16.mxu0 0
    %1616 = vmatpush1.bf16.msra.mxu0 %v1594
    %1617 = vmatprep.subr.bf16.mxu0 0
    %1618 = vmatpush1.bf16.msra.mxu0 %v1593
    %1619 = vmatprep.subr.bf16.mxu0 0
    %1620 = vmatpush1.bf16.msra.mxu0 %v1592
    %1621 = vmatprep.subr.bf16.mxu0 0
    %1622 = vmatpush1.bf16.msra.mxu0 %v1591
    %1623 = vmatprep.subr.bf16.mxu0 0
    %1624 = vmatpush2.bf16.msra.mxu0 0
    %1625 = vmatprep.subr.bf16.mxu0 0
    %1626 = vmatpush2.bf16.msra.mxu0 0
    %1627 = vmatprep.subr.bf16.mxu0 0
    %1628 = vmatpush2.bf16.msra.mxu0 0
    %1629 = vmatprep.subr.bf16.mxu0 0
    %1630 = vmatpush2.bf16.msra.mxu0 0
    %1631 = vmatprep.subr.bf16.mxu0 0
    %1632 = vmatpush2.bf16.msra.mxu0 0
    %1633 = vmatprep.subr.bf16.mxu0 0
    %1634 = vmatpush2.bf16.msra.mxu0 0
    %1635 = vmatprep.subr.bf16.mxu0 0
    %1636 = vmatpush2.bf16.msra.mxu0 0
    %1637 = vmatprep.subr.bf16.mxu0 0
    %1638 = vmatpush2.bf16.msra.mxu0 0
    %1639 = vmatprep.mubr.bf16.mxu0 0
    %1640 = vmatmul.mubr.bf16.gmra.mxu0 %v1535
    %v1641 = vpop.f32.mrf.mxu0
    %v1642 = vadd.f32 %v1557, %v1641
    %v1643 = vpop.f32.mrf.mxu0
    %v1644 = vpop.f32.mrf.mxu0
    %v1645 = vpop.f32.mrf.mxu0
    %1646 = vdwg.mxu0
    %v1647 = vmax.f32 %v1642, 0.0
    %v1648 = vld [vmem:[%s10] sm:$0x1]
    %v1650 = vlaneseq
    %v1651 = vshrl.u32 %v1650, 7
    %v1652 = vsub.s32 0, %v1651
    %v1653 = vrot.slane %v1648, %v1652
    %v1655 = vmul.f32 %v1647, %v1653
    %1656 = vadd.xlane.f32.xlu0 %v1655
    %v1657 = vpop.xlane.xlu0 %1656
    %v1658 = vld [vmem:[%s11] sm:$0x1]
    %v1660 = vlaneseq
    %v1661 = vshrl.u32 %v1660, 7
    %v1662 = vsub.s32 0, %v1661
    %v1663 = vrot.slane %v1658, %v1662
    %v1665 = vadd.f32 %v1657, %v1663
    %1666 = vst [vmem:[%s12] sm:$0xff] %v1665
    // Predicated region
    $region58: #{_lstm1_forward_impl.1} parent=1 // pred_check
      _
    $region59: #{_lstm1_forward_impl.1} parent=1 // pred_check_branch
      %1668 = sbr.rel (0) target = $region61
    $region60: #{_lstm1_forward_impl.1} parent=1 // pred_region
      _
    $region61: #{_lstm1_forward_impl.1} parent=1 // pred_fallthru
      _
    // Predicated region
    $region62: #{_lstm1_forward_impl.1} parent=1 // pred_check
      _
    $region63: #{_lstm1_forward_impl.1} parent=1 // pred_check_branch
      %1670 = sbr.rel (0) target = $region65
    $region64: #{_lstm1_forward_impl.1} parent=1 // pred_region
      _
    $region65: #{_lstm1_forward_impl.1} parent=1 // pred_fallthru
      _
    %1671 = vsyncpa [#allocation3], 1
    %1672 = vsyncpa [#allocation5], 1

</llo_original>
